<compile_context>
chip_gen: v7x
topology: tpu7x:2x2x1
jax: 0.10.0
libtpu: 0.0.40
codegen_flags: <defaults>
</compile_context>

<pallas_src>
import functools

import jax
import jax.numpy as jnp
from jax import lax
from jax.experimental import pallas as pl
from jax.experimental.pallas import tpu as pltpu


def _shortcut_stack_kernel(*refs, H, W, ksizes):
    """Fused ShortcutConnection forward for one batch element.

    refs = (coords, x, w_0, b_0, ..., w_{L-1}, b_{L-1}, out)
      coords : (2, H*W) int32   row 0 = h index of each lane, row 1 = w index
      x      : (1, Ci, H*W)     channels-major, lane-dense input tile
      w_i    : (K_i*K_i, Cout, C_i)  per-tap weight matrices
      b_i    : (Cout, 1)
      out    : (1, Cout, H*W)   channels-major (== flattened NCHW) output tile
    """
    nl = len(ksizes)
    coords_ref = refs[0]
    x_ref = refs[1]
    w_refs = [refs[2 + 2 * i] for i in range(nl)]
    b_refs = [refs[3 + 2 * i] for i in range(nl)]
    o_ref = refs[2 + 2 * nl]

    HW = H * W
    h_idx = coords_ref[0:1, :]                    # (1, HW) int32
    w_idx = coords_ref[1:2, :]                    # (1, HW) int32

    act = x_ref[0]                                # (Ci, HW) f32, lane-dense

    for i, K in enumerate(ksizes):
        p = (K - 1) // 2
        cout = w_refs[i].shape[1]
        acc = jnp.zeros((cout, HW), jnp.float32)
        for t in range(K * K):
            dh = t // K - p                       # static Python ints
            dw = t % K - p
            if dh == 0 and dw == 0:
                tap = act                         # center tap: no shift, no mask
            else:
                shift = (-(dh * W + dw)) % HW     # XLU lane rotation of the flat map
                tap = pltpu.roll(act, shift=shift, axis=1)
                conds = []
                if dh > 0:
                    conds.append(h_idx < (H - dh))
                elif dh < 0:
                    conds.append(h_idx >= (-dh))
                if dw > 0:
                    conds.append(w_idx < (W - dw))
                elif dw < 0:
                    conds.append(w_idx >= (-dw))
                valid = conds[0]
                for c in conds[1:]:
                    valid = jnp.logical_and(valid, c)
                tap = jnp.where(valid, tap, 0.0)  # zero the "same"-padding halo
            # (Cout, Ci) @ (Ci, HW) -> (Cout, HW), accumulated in f32 on the MXU.
            acc = acc + jnp.dot(w_refs[i][t], tap,
                                preferred_element_type=jnp.float32)
        acc = acc + b_refs[i][...]                # (Cout, 1) broadcast over lanes
        if i < nl - 1:
            acc = jnp.maximum(acc, 0.0)           # fused ReLU (not after last conv)
        act = acc

    o_ref[0] = act.astype(o_ref.dtype)            # lane-dense (Cout, HW) store


@jax.jit
def shortcut_forward(x_nchw, params):
    """params: list of (w_hwio (K,K,Ci,Cout), b (Cout,)).  Input/output are NCHW."""
    N, Cin, H, W = x_nchw.shape
    Cout = params[0][0].shape[-1]
    ksizes = tuple(int(w.shape[0]) for w, _ in params)
    # TODO(synk): conv_cfg custom conv layers and even kernel sizes (which change the
    # spatial size per layer) are not fused here.
    assert all(k % 2 == 1 for k in ksizes), "fused path assumes odd ('same') kernels"
    HW = H * W

    x = x_nchw.reshape(N, Cin, HW)                # free reshape: NCHW is already C-major

    # Per-lane spatial coordinates (shared by all layers) -> no in-kernel iota / // / %.
    h_idx = jnp.repeat(jnp.arange(H, dtype=jnp.int32), W)
    w_idx = jnp.tile(jnp.arange(W, dtype=jnp.int32), H)
    coords = jnp.stack([h_idx, w_idx], axis=0)    # (2, HW)

    operands = [coords, x]
    in_specs = [pl.BlockSpec((2, HW), lambda n: (0, 0)),
                pl.BlockSpec((1, Cin, HW), lambda n: (n, 0, 0))]
    ci = Cin
    for i, (w, b) in enumerate(params):
        K = ksizes[i]
        # HWIO (K,K,Ci,Cout) -> per-tap matrices (K*K, Cout, Ci); done once, outside.
        w_taps = jnp.transpose(w.reshape(K * K, ci, Cout), (0, 2, 1))
        b2 = b.reshape(Cout, 1)
        operands += [w_taps, b2]
        in_specs += [pl.BlockSpec((K * K, Cout, ci), lambda n: (0, 0, 0)),
                     pl.BlockSpec((Cout, 1), lambda n: (0, 0))]
        ci = Cout

    kernel = functools.partial(_shortcut_stack_kernel, H=H, W=W, ksizes=ksizes)

    out = pl.pallas_call(
        kernel,
        out_shape=jax.ShapeDtypeStruct((N, Cout, HW), x_nchw.dtype),
        grid=(N,),
        in_specs=in_specs,
        out_specs=pl.BlockSpec((1, Cout, HW), lambda n: (n, 0, 0)),
        compiler_params=pltpu.CompilerParams(dimension_semantics=("parallel",)),
    )(*operands)

    return out.reshape(N, Cout, H, W)              # already NCHW


# ----------------------------------------------------------------------------
# ShortcutConnection module: holds params, forwards through the fused kernel.
# ----------------------------------------------------------------------------
class ShortcutConnection:
    def __init__(self, in_channels, out_channels, kernel_sizes, key):
        self.kernel_sizes = list(kernel_sizes)
        self.params = []
        for i, k in enumerate(self.kernel_sizes):
            inc = in_channels if i == 0 else out_channels
            key, kw_, kb_ = jax.random.split(key, 3)
            fan_in = inc * k * k
            bound = 1.0 / float(jnp.sqrt(fan_in))
            w = jax.random.uniform(kw_, (k, k, inc, out_channels),
                                   jnp.float32, -bound, bound)   # HWIO
            b = jax.random.uniform(kb_, (out_channels,), jnp.float32, -bound, bound)
            self.params.append((w, b))

    def __call__(self, x_nchw):
        return shortcut_forward(x_nchw, self.params)


# ----------------------------------------------------------------------------
# Pure-JAX reference (correctness check only).
# ----------------------------------------------------------------------------
def _reference(x_nchw, params):
    x = jnp.transpose(x_nchw, (0, 2, 3, 1))
    n_layers = len(params)
    for i, (w, b) in enumerate(params):
        k = w.shape[0]
        p = (k - 1) // 2
        x = lax.conv_general_dilated(
            x, w, window_strides=(1, 1), padding=((p, p), (p, p)),
            dimension_numbers=("NHWC", "HWIO", "NHWC"))
        x = x + b[None, None, None, :]
        if i < n_layers - 1:
            x = jnp.maximum(x, 0.0)
    return jnp.transpose(x, (0, 3, 1, 2))


if __name__ == "__main__":
    key = jax.random.PRNGKey(0)
    k_param, k_x = jax.random.split(key)

    in_channels, out_channels = 4, 8
    kernel_sizes = [3, 3, 1]          # typical ttfv2 shortcut config
    N, H, W = 2, 16, 16

    module = ShortcutConnection(in_channels, out_channels, kernel_sizes, k_param)
    x = jax.random.normal(k_x, (N, in_channels, H, W), jnp.float32)  # NCHW input

    out = jax.block_until_ready(module(x))
    ref = jax.block_until_ready(_reference(x, module.params))

    assert out.shape == (N, out_channels, H, W), out.shape
    assert jnp.allclose(out, ref, atol=1e-4, rtol=1e-4), float(jnp.max(jnp.abs(out - ref)))
    print("KERNEL_OK")
</pallas_src>

<mosaic_0001>
module attributes {stable_mosaic.version = 11 : i64} {
  func.func @_shortcut_stack_kernel(%arg0: i32, %arg1: memref<2x256xi32, #tpu.memory_space<vmem>>, %arg2: memref<1x4x256xf32, #tpu.memory_space<vmem>>, %arg3: memref<9x8x4xf32, #tpu.memory_space<vmem>>, %arg4: memref<8x1xf32, #tpu.memory_space<vmem>>, %arg5: memref<9x8x8xf32, #tpu.memory_space<vmem>>, %arg6: memref<8x1xf32, #tpu.memory_space<vmem>>, %arg7: memref<1x8x8xf32, #tpu.memory_space<vmem>>, %arg8: memref<8x1xf32, #tpu.memory_space<vmem>>, %arg9: memref<1x8x256xf32, #tpu.memory_space<vmem>>) attributes {dimension_semantics = [#tpu.dimension_semantics<parallel>], iteration_bounds = array<i64: 2>, scalar_prefetch = 0 : i64, scratch_operands = 0 : i64, tpu.core_type = #tpu.core_type<tc>, window_params = [{pipeline_mode = #tpu.pipeline_mode<synchronous>, transform_indices = @transform_0, window_bounds = array<i64: 2, 256>}, {transform_indices = @transform_1, window_bounds = array<i64: 1, 4, 256>}, {pipeline_mode = #tpu.pipeline_mode<synchronous>, transform_indices = @transform_2, window_bounds = array<i64: 9, 8, 4>}, {pipeline_mode = #tpu.pipeline_mode<synchronous>, transform_indices = @transform_3, window_bounds = array<i64: 8, 1>}, {pipeline_mode = #tpu.pipeline_mode<synchronous>, transform_indices = @transform_4, window_bounds = array<i64: 9, 8, 8>}, {pipeline_mode = #tpu.pipeline_mode<synchronous>, transform_indices = @transform_5, window_bounds = array<i64: 8, 1>}, {pipeline_mode = #tpu.pipeline_mode<synchronous>, transform_indices = @transform_6, window_bounds = array<i64: 1, 8, 8>}, {pipeline_mode = #tpu.pipeline_mode<synchronous>, transform_indices = @transform_7, window_bounds = array<i64: 8, 1>}, {transform_indices = @transform_8, window_bounds = array<i64: 1, 8, 256>}]} {
    %c0 = arith.constant 0 : index
    %c0_0 = arith.constant 0 : index
    %0 = vector.load %arg1[%c0, %c0_0] : memref<2x256xi32, #tpu.memory_space<vmem>>, vector<1x256xi32>
    %c1 = arith.constant 1 : index
    %c0_1 = arith.constant 0 : index
    %1 = vector.load %arg1[%c1, %c0_1] : memref<2x256xi32, #tpu.memory_space<vmem>>, vector<1x256xi32>
    %c0_2 = arith.constant 0 : index
    %c0_3 = arith.constant 0 : index
    %c0_4 = arith.constant 0 : index
    %2 = vector.load %arg2[%c0_2, %c0_3, %c0_4] : memref<1x4x256xf32, #tpu.memory_space<vmem>>, vector<1x4x256xf32>
    %3 = vector.shape_cast %2 : vector<1x4x256xf32> to vector<4x256xf32>
    %cst = arith.constant 0.000000e+00 : f32
    %4 = vector.broadcast %cst : f32 to vector<8x256xf32>
    %c17_i32 = arith.constant 17 : i32
    %5 = tpu.dynamic_rotate %3 by %c17_i32 dim 1 : vector<4x256xf32>, i32 -> vector<4x256xf32>
    %c1_i32 = arith.constant 1 : i32
    %6 = vector.broadcast %c1_i32 : i32 to vector<1x256xi32>
    %7 = arith.cmpi sge, %0, %6 : vector<1x256xi32>
    %c1_i32_5 = arith.constant 1 : i32
    %8 = vector.broadcast %c1_i32_5 : i32 to vector<1x256xi32>
    %9 = arith.cmpi sge, %1, %8 : vector<1x256xi32>
    %10 = arith.andi %7, %9 : vector<1x256xi1>
    %cst_6 = arith.constant 0.000000e+00 : f32
    %11 = vector.shape_cast %10 : vector<1x256xi1> to vector<1x256xi1>
    %12 = vector.broadcast %11 : vector<1x256xi1> to vector<4x256xi1>
    %13 = vector.broadcast %cst_6 : f32 to vector<4x256xf32>
    %14 = arith.select %12, %5, %13 : vector<4x256xi1>, vector<4x256xf32>
    %c0_7 = arith.constant 0 : index
    %c0_8 = arith.constant 0 : index
    %c0_9 = arith.constant 0 : index
    %15 = vector.load %arg3[%c0_7, %c0_8, %c0_9] : memref<9x8x4xf32, #tpu.memory_space<vmem>>, vector<1x8x4xf32>
    %16 = vector.shape_cast %15 : vector<1x8x4xf32> to vector<8x4xf32>
    %cst_10 = arith.constant dense<0.000000e+00> : vector<8x256xf32>
    %17 = tpu.matmul %16, %14, %cst_10 {dimension_numbers = #tpu.dot_dimension_numbers<[1], [0], [0], [1], [0, 0, 1, 1], [], []>} : vector<8x4xf32>, vector<4x256xf32>, vector<8x256xf32> -> vector<8x256xf32>
    %18 = arith.addf %4, %17 : vector<8x256xf32>
    %c16_i32 = arith.constant 16 : i32
    %19 = tpu.dynamic_rotate %3 by %c16_i32 dim 1 : vector<4x256xf32>, i32 -> vector<4x256xf32>
    %c1_i32_11 = arith.constant 1 : i32
    %20 = vector.broadcast %c1_i32_11 : i32 to vector<1x256xi32>
    %21 = arith.cmpi sge, %0, %20 : vector<1x256xi32>
    %cst_12 = arith.constant 0.000000e+00 : f32
    %22 = vector.shape_cast %21 : vector<1x256xi1> to vector<1x256xi1>
    %23 = vector.broadcast %22 : vector<1x256xi1> to vector<4x256xi1>
    %24 = vector.broadcast %cst_12 : f32 to vector<4x256xf32>
    %25 = arith.select %23, %19, %24 : vector<4x256xi1>, vector<4x256xf32>
    %c1_13 = arith.constant 1 : index
    %c0_14 = arith.constant 0 : index
    %c0_15 = arith.constant 0 : index
    %26 = vector.load %arg3[%c1_13, %c0_14, %c0_15] : memref<9x8x4xf32, #tpu.memory_space<vmem>>, vector<1x8x4xf32>
    %27 = vector.shape_cast %26 : vector<1x8x4xf32> to vector<8x4xf32>
    %cst_16 = arith.constant dense<0.000000e+00> : vector<8x256xf32>
    %28 = tpu.matmul %27, %25, %cst_16 {dimension_numbers = #tpu.dot_dimension_numbers<[1], [0], [0], [1], [0, 0, 1, 1], [], []>} : vector<8x4xf32>, vector<4x256xf32>, vector<8x256xf32> -> vector<8x256xf32>
    %29 = arith.addf %18, %28 : vector<8x256xf32>
    %c15_i32 = arith.constant 15 : i32
    %30 = tpu.dynamic_rotate %3 by %c15_i32 dim 1 : vector<4x256xf32>, i32 -> vector<4x256xf32>
    %c1_i32_17 = arith.constant 1 : i32
    %31 = vector.broadcast %c1_i32_17 : i32 to vector<1x256xi32>
    %32 = arith.cmpi sge, %0, %31 : vector<1x256xi32>
    %c15_i32_18 = arith.constant 15 : i32
    %33 = vector.broadcast %c15_i32_18 : i32 to vector<1x256xi32>
    %34 = arith.cmpi slt, %1, %33 : vector<1x256xi32>
    %35 = arith.andi %32, %34 : vector<1x256xi1>
    %cst_19 = arith.constant 0.000000e+00 : f32
    %36 = vector.shape_cast %35 : vector<1x256xi1> to vector<1x256xi1>
    %37 = vector.broadcast %36 : vector<1x256xi1> to vector<4x256xi1>
    %38 = vector.broadcast %cst_19 : f32 to vector<4x256xf32>
    %39 = arith.select %37, %30, %38 : vector<4x256xi1>, vector<4x256xf32>
    %c2 = arith.constant 2 : index
    %c0_20 = arith.constant 0 : index
    %c0_21 = arith.constant 0 : index
    %40 = vector.load %arg3[%c2, %c0_20, %c0_21] : memref<9x8x4xf32, #tpu.memory_space<vmem>>, vector<1x8x4xf32>
    %41 = vector.shape_cast %40 : vector<1x8x4xf32> to vector<8x4xf32>
    %cst_22 = arith.constant dense<0.000000e+00> : vector<8x256xf32>
    %42 = tpu.matmul %41, %39, %cst_22 {dimension_numbers = #tpu.dot_dimension_numbers<[1], [0], [0], [1], [0, 0, 1, 1], [], []>} : vector<8x4xf32>, vector<4x256xf32>, vector<8x256xf32> -> vector<8x256xf32>
    %43 = arith.addf %29, %42 : vector<8x256xf32>
    %c1_i32_23 = arith.constant 1 : i32
    %44 = tpu.dynamic_rotate %3 by %c1_i32_23 dim 1 : vector<4x256xf32>, i32 -> vector<4x256xf32>
    %c1_i32_24 = arith.constant 1 : i32
    %45 = vector.broadcast %c1_i32_24 : i32 to vector<1x256xi32>
    %46 = arith.cmpi sge, %1, %45 : vector<1x256xi32>
    %cst_25 = arith.constant 0.000000e+00 : f32
    %47 = vector.shape_cast %46 : vector<1x256xi1> to vector<1x256xi1>
    %48 = vector.broadcast %47 : vector<1x256xi1> to vector<4x256xi1>
    %49 = vector.broadcast %cst_25 : f32 to vector<4x256xf32>
    %50 = arith.select %48, %44, %49 : vector<4x256xi1>, vector<4x256xf32>
    %c3 = arith.constant 3 : index
    %c0_26 = arith.constant 0 : index
    %c0_27 = arith.constant 0 : index
    %51 = vector.load %arg3[%c3, %c0_26, %c0_27] : memref<9x8x4xf32, #tpu.memory_space<vmem>>, vector<1x8x4xf32>
    %52 = vector.shape_cast %51 : vector<1x8x4xf32> to vector<8x4xf32>
    %cst_28 = arith.constant dense<0.000000e+00> : vector<8x256xf32>
    %53 = tpu.matmul %52, %50, %cst_28 {dimension_numbers = #tpu.dot_dimension_numbers<[1], [0], [0], [1], [0, 0, 1, 1], [], []>} : vector<8x4xf32>, vector<4x256xf32>, vector<8x256xf32> -> vector<8x256xf32>
    %54 = arith.addf %43, %53 : vector<8x256xf32>
    %c4 = arith.constant 4 : index
    %c0_29 = arith.constant 0 : index
    %c0_30 = arith.constant 0 : index
    %55 = vector.load %arg3[%c4, %c0_29, %c0_30] : memref<9x8x4xf32, #tpu.memory_space<vmem>>, vector<1x8x4xf32>
    %56 = vector.shape_cast %55 : vector<1x8x4xf32> to vector<8x4xf32>
    %cst_31 = arith.constant dense<0.000000e+00> : vector<8x256xf32>
    %57 = tpu.matmul %56, %3, %cst_31 {dimension_numbers = #tpu.dot_dimension_numbers<[1], [0], [0], [1], [0, 0, 1, 1], [], []>} : vector<8x4xf32>, vector<4x256xf32>, vector<8x256xf32> -> vector<8x256xf32>
    %58 = arith.addf %54, %57 : vector<8x256xf32>
    %c255_i32 = arith.constant 255 : i32
    %59 = tpu.dynamic_rotate %3 by %c255_i32 dim 1 : vector<4x256xf32>, i32 -> vector<4x256xf32>
    %c15_i32_32 = arith.constant 15 : i32
    %60 = vector.broadcast %c15_i32_32 : i32 to vector<1x256xi32>
    %61 = arith.cmpi slt, %1, %60 : vector<1x256xi32>
    %cst_33 = arith.constant 0.000000e+00 : f32
    %62 = vector.shape_cast %61 : vector<1x256xi1> to vector<1x256xi1>
    %63 = vector.broadcast %62 : vector<1x256xi1> to vector<4x256xi1>
    %64 = vector.broadcast %cst_33 : f32 to vector<4x256xf32>
    %65 = arith.select %63, %59, %64 : vector<4x256xi1>, vector<4x256xf32>
    %c5 = arith.constant 5 : index
    %c0_34 = arith.constant 0 : index
    %c0_35 = arith.constant 0 : index
    %66 = vector.load %arg3[%c5, %c0_34, %c0_35] : memref<9x8x4xf32, #tpu.memory_space<vmem>>, vector<1x8x4xf32>
    %67 = vector.shape_cast %66 : vector<1x8x4xf32> to vector<8x4xf32>
    %cst_36 = arith.constant dense<0.000000e+00> : vector<8x256xf32>
    %68 = tpu.matmul %67, %65, %cst_36 {dimension_numbers = #tpu.dot_dimension_numbers<[1], [0], [0], [1], [0, 0, 1, 1], [], []>} : vector<8x4xf32>, vector<4x256xf32>, vector<8x256xf32> -> vector<8x256xf32>
    %69 = arith.addf %58, %68 : vector<8x256xf32>
    %c241_i32 = arith.constant 241 : i32
    %70 = tpu.dynamic_rotate %3 by %c241_i32 dim 1 : vector<4x256xf32>, i32 -> vector<4x256xf32>
    %c15_i32_37 = arith.constant 15 : i32
    %71 = vector.broadcast %c15_i32_37 : i32 to vector<1x256xi32>
    %72 = arith.cmpi slt, %0, %71 : vector<1x256xi32>
    %c1_i32_38 = arith.constant 1 : i32
    %73 = vector.broadcast %c1_i32_38 : i32 to vector<1x256xi32>
    %74 = arith.cmpi sge, %1, %73 : vector<1x256xi32>
    %75 = arith.andi %72, %74 : vector<1x256xi1>
    %cst_39 = arith.constant 0.000000e+00 : f32
    %76 = vector.shape_cast %75 : vector<1x256xi1> to vector<1x256xi1>
    %77 = vector.broadcast %76 : vector<1x256xi1> to vector<4x256xi1>
    %78 = vector.broadcast %cst_39 : f32 to vector<4x256xf32>
    %79 = arith.select %77, %70, %78 : vector<4x256xi1>, vector<4x256xf32>
    %c6 = arith.constant 6 : index
    %c0_40 = arith.constant 0 : index
    %c0_41 = arith.constant 0 : index
    %80 = vector.load %arg3[%c6, %c0_40, %c0_41] : memref<9x8x4xf32, #tpu.memory_space<vmem>>, vector<1x8x4xf32>
    %81 = vector.shape_cast %80 : vector<1x8x4xf32> to vector<8x4xf32>
    %cst_42 = arith.constant dense<0.000000e+00> : vector<8x256xf32>
    %82 = tpu.matmul %81, %79, %cst_42 {dimension_numbers = #tpu.dot_dimension_numbers<[1], [0], [0], [1], [0, 0, 1, 1], [], []>} : vector<8x4xf32>, vector<4x256xf32>, vector<8x256xf32> -> vector<8x256xf32>
    %83 = arith.addf %69, %82 : vector<8x256xf32>
    %c240_i32 = arith.constant 240 : i32
    %84 = tpu.dynamic_rotate %3 by %c240_i32 dim 1 : vector<4x256xf32>, i32 -> vector<4x256xf32>
    %c15_i32_43 = arith.constant 15 : i32
    %85 = vector.broadcast %c15_i32_43 : i32 to vector<1x256xi32>
    %86 = arith.cmpi slt, %0, %85 : vector<1x256xi32>
    %cst_44 = arith.constant 0.000000e+00 : f32
    %87 = vector.shape_cast %86 : vector<1x256xi1> to vector<1x256xi1>
    %88 = vector.broadcast %87 : vector<1x256xi1> to vector<4x256xi1>
    %89 = vector.broadcast %cst_44 : f32 to vector<4x256xf32>
    %90 = arith.select %88, %84, %89 : vector<4x256xi1>, vector<4x256xf32>
    %c7 = arith.constant 7 : index
    %c0_45 = arith.constant 0 : index
    %c0_46 = arith.constant 0 : index
    %91 = vector.load %arg3[%c7, %c0_45, %c0_46] : memref<9x8x4xf32, #tpu.memory_space<vmem>>, vector<1x8x4xf32>
    %92 = vector.shape_cast %91 : vector<1x8x4xf32> to vector<8x4xf32>
    %cst_47 = arith.constant dense<0.000000e+00> : vector<8x256xf32>
    %93 = tpu.matmul %92, %90, %cst_47 {dimension_numbers = #tpu.dot_dimension_numbers<[1], [0], [0], [1], [0, 0, 1, 1], [], []>} : vector<8x4xf32>, vector<4x256xf32>, vector<8x256xf32> -> vector<8x256xf32>
    %94 = arith.addf %83, %93 : vector<8x256xf32>
    %c239_i32 = arith.constant 239 : i32
    %95 = tpu.dynamic_rotate %3 by %c239_i32 dim 1 : vector<4x256xf32>, i32 -> vector<4x256xf32>
    %c15_i32_48 = arith.constant 15 : i32
    %96 = vector.broadcast %c15_i32_48 : i32 to vector<1x256xi32>
    %97 = arith.cmpi slt, %0, %96 : vector<1x256xi32>
    %c15_i32_49 = arith.constant 15 : i32
    %98 = vector.broadcast %c15_i32_49 : i32 to vector<1x256xi32>
    %99 = arith.cmpi slt, %1, %98 : vector<1x256xi32>
    %100 = arith.andi %97, %99 : vector<1x256xi1>
    %cst_50 = arith.constant 0.000000e+00 : f32
    %101 = vector.shape_cast %100 : vector<1x256xi1> to vector<1x256xi1>
    %102 = vector.broadcast %101 : vector<1x256xi1> to vector<4x256xi1>
    %103 = vector.broadcast %cst_50 : f32 to vector<4x256xf32>
    %104 = arith.select %102, %95, %103 : vector<4x256xi1>, vector<4x256xf32>
    %c8 = arith.constant 8 : index
    %c0_51 = arith.constant 0 : index
    %c0_52 = arith.constant 0 : index
    %105 = vector.load %arg3[%c8, %c0_51, %c0_52] : memref<9x8x4xf32, #tpu.memory_space<vmem>>, vector<1x8x4xf32>
    %106 = vector.shape_cast %105 : vector<1x8x4xf32> to vector<8x4xf32>
    %cst_53 = arith.constant dense<0.000000e+00> : vector<8x256xf32>
    %107 = tpu.matmul %106, %104, %cst_53 {dimension_numbers = #tpu.dot_dimension_numbers<[1], [0], [0], [1], [0, 0, 1, 1], [], []>} : vector<8x4xf32>, vector<4x256xf32>, vector<8x256xf32> -> vector<8x256xf32>
    %108 = arith.addf %94, %107 : vector<8x256xf32>
    %c0_54 = arith.constant 0 : index
    %c0_55 = arith.constant 0 : index
    %109 = vector.load %arg4[%c0_54, %c0_55] : memref<8x1xf32, #tpu.memory_space<vmem>>, vector<8x1xf32>
    %110 = vector.broadcast %109 : vector<8x1xf32> to vector<8x256xf32>
    %111 = arith.addf %108, %110 : vector<8x256xf32>
    %cst_56 = arith.constant 0.000000e+00 : f32
    %112 = vector.broadcast %cst_56 : f32 to vector<8x256xf32>
    %113 = arith.maximumf %111, %112 : vector<8x256xf32>
    %cst_57 = arith.constant 0.000000e+00 : f32
    %114 = vector.broadcast %cst_57 : f32 to vector<8x256xf32>
    %c17_i32_58 = arith.constant 17 : i32
    %115 = tpu.dynamic_rotate %113 by %c17_i32_58 dim 1 : vector<8x256xf32>, i32 -> vector<8x256xf32>
    %c1_i32_59 = arith.constant 1 : i32
    %116 = vector.broadcast %c1_i32_59 : i32 to vector<1x256xi32>
    %117 = arith.cmpi sge, %0, %116 : vector<1x256xi32>
    %c1_i32_60 = arith.constant 1 : i32
    %118 = vector.broadcast %c1_i32_60 : i32 to vector<1x256xi32>
    %119 = arith.cmpi sge, %1, %118 : vector<1x256xi32>
    %120 = arith.andi %117, %119 : vector<1x256xi1>
    %cst_61 = arith.constant 0.000000e+00 : f32
    %121 = vector.shape_cast %120 : vector<1x256xi1> to vector<1x256xi1>
    %122 = vector.broadcast %121 : vector<1x256xi1> to vector<8x256xi1>
    %123 = vector.broadcast %cst_61 : f32 to vector<8x256xf32>
    %124 = arith.select %122, %115, %123 : vector<8x256xi1>, vector<8x256xf32>
    %c0_62 = arith.constant 0 : index
    %c0_63 = arith.constant 0 : index
    %c0_64 = arith.constant 0 : index
    %125 = vector.load %arg5[%c0_62, %c0_63, %c0_64] : memref<9x8x8xf32, #tpu.memory_space<vmem>>, vector<1x8x8xf32>
    %126 = vector.shape_cast %125 : vector<1x8x8xf32> to vector<8x8xf32>
    %cst_65 = arith.constant dense<0.000000e+00> : vector<8x256xf32>
    %127 = tpu.matmul %126, %124, %cst_65 {dimension_numbers = #tpu.dot_dimension_numbers<[1], [0], [0], [1], [0, 0, 1, 1], [], []>} : vector<8x8xf32>, vector<8x256xf32>, vector<8x256xf32> -> vector<8x256xf32>
    %128 = arith.addf %114, %127 : vector<8x256xf32>
    %c16_i32_66 = arith.constant 16 : i32
    %129 = tpu.dynamic_rotate %113 by %c16_i32_66 dim 1 : vector<8x256xf32>, i32 -> vector<8x256xf32>
    %c1_i32_67 = arith.constant 1 : i32
    %130 = vector.broadcast %c1_i32_67 : i32 to vector<1x256xi32>
    %131 = arith.cmpi sge, %0, %130 : vector<1x256xi32>
    %cst_68 = arith.constant 0.000000e+00 : f32
    %132 = vector.shape_cast %131 : vector<1x256xi1> to vector<1x256xi1>
    %133 = vector.broadcast %132 : vector<1x256xi1> to vector<8x256xi1>
    %134 = vector.broadcast %cst_68 : f32 to vector<8x256xf32>
    %135 = arith.select %133, %129, %134 : vector<8x256xi1>, vector<8x256xf32>
    %c1_69 = arith.constant 1 : index
    %c0_70 = arith.constant 0 : index
    %c0_71 = arith.constant 0 : index
    %136 = vector.load %arg5[%c1_69, %c0_70, %c0_71] : memref<9x8x8xf32, #tpu.memory_space<vmem>>, vector<1x8x8xf32>
    %137 = vector.shape_cast %136 : vector<1x8x8xf32> to vector<8x8xf32>
    %cst_72 = arith.constant dense<0.000000e+00> : vector<8x256xf32>
    %138 = tpu.matmul %137, %135, %cst_72 {dimension_numbers = #tpu.dot_dimension_numbers<[1], [0], [0], [1], [0, 0, 1, 1], [], []>} : vector<8x8xf32>, vector<8x256xf32>, vector<8x256xf32> -> vector<8x256xf32>
    %139 = arith.addf %128, %138 : vector<8x256xf32>
    %c15_i32_73 = arith.constant 15 : i32
    %140 = tpu.dynamic_rotate %113 by %c15_i32_73 dim 1 : vector<8x256xf32>, i32 -> vector<8x256xf32>
    %c1_i32_74 = arith.constant 1 : i32
    %141 = vector.broadcast %c1_i32_74 : i32 to vector<1x256xi32>
    %142 = arith.cmpi sge, %0, %141 : vector<1x256xi32>
    %c15_i32_75 = arith.constant 15 : i32
    %143 = vector.broadcast %c15_i32_75 : i32 to vector<1x256xi32>
    %144 = arith.cmpi slt, %1, %143 : vector<1x256xi32>
    %145 = arith.andi %142, %144 : vector<1x256xi1>
    %cst_76 = arith.constant 0.000000e+00 : f32
    %146 = vector.shape_cast %145 : vector<1x256xi1> to vector<1x256xi1>
    %147 = vector.broadcast %146 : vector<1x256xi1> to vector<8x256xi1>
    %148 = vector.broadcast %cst_76 : f32 to vector<8x256xf32>
    %149 = arith.select %147, %140, %148 : vector<8x256xi1>, vector<8x256xf32>
    %c2_77 = arith.constant 2 : index
    %c0_78 = arith.constant 0 : index
    %c0_79 = arith.constant 0 : index
    %150 = vector.load %arg5[%c2_77, %c0_78, %c0_79] : memref<9x8x8xf32, #tpu.memory_space<vmem>>, vector<1x8x8xf32>
    %151 = vector.shape_cast %150 : vector<1x8x8xf32> to vector<8x8xf32>
    %cst_80 = arith.constant dense<0.000000e+00> : vector<8x256xf32>
    %152 = tpu.matmul %151, %149, %cst_80 {dimension_numbers = #tpu.dot_dimension_numbers<[1], [0], [0], [1], [0, 0, 1, 1], [], []>} : vector<8x8xf32>, vector<8x256xf32>, vector<8x256xf32> -> vector<8x256xf32>
    %153 = arith.addf %139, %152 : vector<8x256xf32>
    %c1_i32_81 = arith.constant 1 : i32
    %154 = tpu.dynamic_rotate %113 by %c1_i32_81 dim 1 : vector<8x256xf32>, i32 -> vector<8x256xf32>
    %c1_i32_82 = arith.constant 1 : i32
    %155 = vector.broadcast %c1_i32_82 : i32 to vector<1x256xi32>
    %156 = arith.cmpi sge, %1, %155 : vector<1x256xi32>
    %cst_83 = arith.constant 0.000000e+00 : f32
    %157 = vector.shape_cast %156 : vector<1x256xi1> to vector<1x256xi1>
    %158 = vector.broadcast %157 : vector<1x256xi1> to vector<8x256xi1>
    %159 = vector.broadcast %cst_83 : f32 to vector<8x256xf32>
    %160 = arith.select %158, %154, %159 : vector<8x256xi1>, vector<8x256xf32>
    %c3_84 = arith.constant 3 : index
    %c0_85 = arith.constant 0 : index
    %c0_86 = arith.constant 0 : index
    %161 = vector.load %arg5[%c3_84, %c0_85, %c0_86] : memref<9x8x8xf32, #tpu.memory_space<vmem>>, vector<1x8x8xf32>
    %162 = vector.shape_cast %161 : vector<1x8x8xf32> to vector<8x8xf32>
    %cst_87 = arith.constant dense<0.000000e+00> : vector<8x256xf32>
    %163 = tpu.matmul %162, %160, %cst_87 {dimension_numbers = #tpu.dot_dimension_numbers<[1], [0], [0], [1], [0, 0, 1, 1], [], []>} : vector<8x8xf32>, vector<8x256xf32>, vector<8x256xf32> -> vector<8x256xf32>
    %164 = arith.addf %153, %163 : vector<8x256xf32>
    %c4_88 = arith.constant 4 : index
    %c0_89 = arith.constant 0 : index
    %c0_90 = arith.constant 0 : index
    %165 = vector.load %arg5[%c4_88, %c0_89, %c0_90] : memref<9x8x8xf32, #tpu.memory_space<vmem>>, vector<1x8x8xf32>
    %166 = vector.shape_cast %165 : vector<1x8x8xf32> to vector<8x8xf32>
    %cst_91 = arith.constant dense<0.000000e+00> : vector<8x256xf32>
    %167 = tpu.matmul %166, %113, %cst_91 {dimension_numbers = #tpu.dot_dimension_numbers<[1], [0], [0], [1], [0, 0, 1, 1], [], []>} : vector<8x8xf32>, vector<8x256xf32>, vector<8x256xf32> -> vector<8x256xf32>
    %168 = arith.addf %164, %167 : vector<8x256xf32>
    %c255_i32_92 = arith.constant 255 : i32
    %169 = tpu.dynamic_rotate %113 by %c255_i32_92 dim 1 : vector<8x256xf32>, i32 -> vector<8x256xf32>
    %c15_i32_93 = arith.constant 15 : i32
    %170 = vector.broadcast %c15_i32_93 : i32 to vector<1x256xi32>
    %171 = arith.cmpi slt, %1, %170 : vector<1x256xi32>
    %cst_94 = arith.constant 0.000000e+00 : f32
    %172 = vector.shape_cast %171 : vector<1x256xi1> to vector<1x256xi1>
    %173 = vector.broadcast %172 : vector<1x256xi1> to vector<8x256xi1>
    %174 = vector.broadcast %cst_94 : f32 to vector<8x256xf32>
    %175 = arith.select %173, %169, %174 : vector<8x256xi1>, vector<8x256xf32>
    %c5_95 = arith.constant 5 : index
    %c0_96 = arith.constant 0 : index
    %c0_97 = arith.constant 0 : index
    %176 = vector.load %arg5[%c5_95, %c0_96, %c0_97] : memref<9x8x8xf32, #tpu.memory_space<vmem>>, vector<1x8x8xf32>
    %177 = vector.shape_cast %176 : vector<1x8x8xf32> to vector<8x8xf32>
    %cst_98 = arith.constant dense<0.000000e+00> : vector<8x256xf32>
    %178 = tpu.matmul %177, %175, %cst_98 {dimension_numbers = #tpu.dot_dimension_numbers<[1], [0], [0], [1], [0, 0, 1, 1], [], []>} : vector<8x8xf32>, vector<8x256xf32>, vector<8x256xf32> -> vector<8x256xf32>
    %179 = arith.addf %168, %178 : vector<8x256xf32>
    %c241_i32_99 = arith.constant 241 : i32
    %180 = tpu.dynamic_rotate %113 by %c241_i32_99 dim 1 : vector<8x256xf32>, i32 -> vector<8x256xf32>
    %c15_i32_100 = arith.constant 15 : i32
    %181 = vector.broadcast %c15_i32_100 : i32 to vector<1x256xi32>
    %182 = arith.cmpi slt, %0, %181 : vector<1x256xi32>
    %c1_i32_101 = arith.constant 1 : i32
    %183 = vector.broadcast %c1_i32_101 : i32 to vector<1x256xi32>
    %184 = arith.cmpi sge, %1, %183 : vector<1x256xi32>
    %185 = arith.andi %182, %184 : vector<1x256xi1>
    %cst_102 = arith.constant 0.000000e+00 : f32
    %186 = vector.shape_cast %185 : vector<1x256xi1> to vector<1x256xi1>
    %187 = vector.broadcast %186 : vector<1x256xi1> to vector<8x256xi1>
    %188 = vector.broadcast %cst_102 : f32 to vector<8x256xf32>
    %189 = arith.select %187, %180, %188 : vector<8x256xi1>, vector<8x256xf32>
    %c6_103 = arith.constant 6 : index
    %c0_104 = arith.constant 0 : index
    %c0_105 = arith.constant 0 : index
    %190 = vector.load %arg5[%c6_103, %c0_104, %c0_105] : memref<9x8x8xf32, #tpu.memory_space<vmem>>, vector<1x8x8xf32>
    %191 = vector.shape_cast %190 : vector<1x8x8xf32> to vector<8x8xf32>
    %cst_106 = arith.constant dense<0.000000e+00> : vector<8x256xf32>
    %192 = tpu.matmul %191, %189, %cst_106 {dimension_numbers = #tpu.dot_dimension_numbers<[1], [0], [0], [1], [0, 0, 1, 1], [], []>} : vector<8x8xf32>, vector<8x256xf32>, vector<8x256xf32> -> vector<8x256xf32>
    %193 = arith.addf %179, %192 : vector<8x256xf32>
    %c240_i32_107 = arith.constant 240 : i32
    %194 = tpu.dynamic_rotate %113 by %c240_i32_107 dim 1 : vector<8x256xf32>, i32 -> vector<8x256xf32>
    %c15_i32_108 = arith.constant 15 : i32
    %195 = vector.broadcast %c15_i32_108 : i32 to vector<1x256xi32>
    %196 = arith.cmpi slt, %0, %195 : vector<1x256xi32>
    %cst_109 = arith.constant 0.000000e+00 : f32
    %197 = vector.shape_cast %196 : vector<1x256xi1> to vector<1x256xi1>
    %198 = vector.broadcast %197 : vector<1x256xi1> to vector<8x256xi1>
    %199 = vector.broadcast %cst_109 : f32 to vector<8x256xf32>
    %200 = arith.select %198, %194, %199 : vector<8x256xi1>, vector<8x256xf32>
    %c7_110 = arith.constant 7 : index
    %c0_111 = arith.constant 0 : index
    %c0_112 = arith.constant 0 : index
    %201 = vector.load %arg5[%c7_110, %c0_111, %c0_112] : memref<9x8x8xf32, #tpu.memory_space<vmem>>, vector<1x8x8xf32>
    %202 = vector.shape_cast %201 : vector<1x8x8xf32> to vector<8x8xf32>
    %cst_113 = arith.constant dense<0.000000e+00> : vector<8x256xf32>
    %203 = tpu.matmul %202, %200, %cst_113 {dimension_numbers = #tpu.dot_dimension_numbers<[1], [0], [0], [1], [0, 0, 1, 1], [], []>} : vector<8x8xf32>, vector<8x256xf32>, vector<8x256xf32> -> vector<8x256xf32>
    %204 = arith.addf %193, %203 : vector<8x256xf32>
    %c239_i32_114 = arith.constant 239 : i32
    %205 = tpu.dynamic_rotate %113 by %c239_i32_114 dim 1 : vector<8x256xf32>, i32 -> vector<8x256xf32>
    %c15_i32_115 = arith.constant 15 : i32
    %206 = vector.broadcast %c15_i32_115 : i32 to vector<1x256xi32>
    %207 = arith.cmpi slt, %0, %206 : vector<1x256xi32>
    %c15_i32_116 = arith.constant 15 : i32
    %208 = vector.broadcast %c15_i32_116 : i32 to vector<1x256xi32>
    %209 = arith.cmpi slt, %1, %208 : vector<1x256xi32>
    %210 = arith.andi %207, %209 : vector<1x256xi1>
    %cst_117 = arith.constant 0.000000e+00 : f32
    %211 = vector.shape_cast %210 : vector<1x256xi1> to vector<1x256xi1>
    %212 = vector.broadcast %211 : vector<1x256xi1> to vector<8x256xi1>
    %213 = vector.broadcast %cst_117 : f32 to vector<8x256xf32>
    %214 = arith.select %212, %205, %213 : vector<8x256xi1>, vector<8x256xf32>
    %c8_118 = arith.constant 8 : index
    %c0_119 = arith.constant 0 : index
    %c0_120 = arith.constant 0 : index
    %215 = vector.load %arg5[%c8_118, %c0_119, %c0_120] : memref<9x8x8xf32, #tpu.memory_space<vmem>>, vector<1x8x8xf32>
    %216 = vector.shape_cast %215 : vector<1x8x8xf32> to vector<8x8xf32>
    %cst_121 = arith.constant dense<0.000000e+00> : vector<8x256xf32>
    %217 = tpu.matmul %216, %214, %cst_121 {dimension_numbers = #tpu.dot_dimension_numbers<[1], [0], [0], [1], [0, 0, 1, 1], [], []>} : vector<8x8xf32>, vector<8x256xf32>, vector<8x256xf32> -> vector<8x256xf32>
    %218 = arith.addf %204, %217 : vector<8x256xf32>
    %c0_122 = arith.constant 0 : index
    %c0_123 = arith.constant 0 : index
    %219 = vector.load %arg6[%c0_122, %c0_123] : memref<8x1xf32, #tpu.memory_space<vmem>>, vector<8x1xf32>
    %220 = vector.broadcast %219 : vector<8x1xf32> to vector<8x256xf32>
    %221 = arith.addf %218, %220 : vector<8x256xf32>
    %cst_124 = arith.constant 0.000000e+00 : f32
    %222 = vector.broadcast %cst_124 : f32 to vector<8x256xf32>
    %223 = arith.maximumf %221, %222 : vector<8x256xf32>
    %cst_125 = arith.constant 0.000000e+00 : f32
    %224 = vector.broadcast %cst_125 : f32 to vector<8x256xf32>
    %c0_126 = arith.constant 0 : index
    %c0_127 = arith.constant 0 : index
    %c0_128 = arith.constant 0 : index
    %225 = vector.load %arg7[%c0_126, %c0_127, %c0_128] : memref<1x8x8xf32, #tpu.memory_space<vmem>>, vector<1x8x8xf32>
    %226 = vector.shape_cast %225 : vector<1x8x8xf32> to vector<8x8xf32>
    %cst_129 = arith.constant dense<0.000000e+00> : vector<8x256xf32>
    %227 = tpu.matmul %226, %223, %cst_129 {dimension_numbers = #tpu.dot_dimension_numbers<[1], [0], [0], [1], [0, 0, 1, 1], [], []>} : vector<8x8xf32>, vector<8x256xf32>, vector<8x256xf32> -> vector<8x256xf32>
    %228 = arith.addf %224, %227 : vector<8x256xf32>
    %c0_130 = arith.constant 0 : index
    %c0_131 = arith.constant 0 : index
    %229 = vector.load %arg8[%c0_130, %c0_131] : memref<8x1xf32, #tpu.memory_space<vmem>>, vector<8x1xf32>
    %230 = vector.broadcast %229 : vector<8x1xf32> to vector<8x256xf32>
    %231 = arith.addf %228, %230 : vector<8x256xf32>
    %c0_132 = arith.constant 0 : index
    %c0_133 = arith.constant 0 : index
    %c0_134 = arith.constant 0 : index
    %232 = vector.load %arg9[%c0_132, %c0_133, %c0_134] : memref<1x8x256xf32, #tpu.memory_space<vmem>>, vector<1x8x256xf32>
    %233 = vector.shape_cast %232 : vector<1x8x256xf32> to vector<8x256xf32>
    %234 = vector.shape_cast %231 : vector<8x256xf32> to vector<1x8x256xf32>
    tpu.vector_store %arg9[%c0_132, %c0_133, %c0_134], %234 {strides = array<i32>} : memref<1x8x256xf32, #tpu.memory_space<vmem>>, vector<1x8x256xf32>,
    return
  }
  func.func @transform_0(%arg0: i32) -> (i32, i32) {
    %c0_i32 = arith.constant 0 : i32
    %c0_i32_0 = arith.constant 0 : i32
    %c0_i32_1 = arith.constant 0 : i32
    return %c0_i32, %c0_i32_0 : i32, i32
  }
  func.func @transform_1(%arg0: i32) -> (i32, i32, i32) {
    %c0_i32 = arith.constant 0 : i32
    %c0_i32_0 = arith.constant 0 : i32
    %c0_i32_1 = arith.constant 0 : i32
    return %arg0, %c0_i32, %c0_i32_0 : i32, i32, i32
  }
  func.func @transform_2(%arg0: i32) -> (i32, i32, i32) {
    %c0_i32 = arith.constant 0 : i32
    %c0_i32_0 = arith.constant 0 : i32
    %c0_i32_1 = arith.constant 0 : i32
    %c0_i32_2 = arith.constant 0 : i32
    return %c0_i32, %c0_i32_0, %c0_i32_1 : i32, i32, i32
  }
  func.func @transform_3(%arg0: i32) -> (i32, i32) {
    %c0_i32 = arith.constant 0 : i32
    %c0_i32_0 = arith.constant 0 : i32
    %c0_i32_1 = arith.constant 0 : i32
    return %c0_i32, %c0_i32_0 : i32, i32
  }
  func.func @transform_4(%arg0: i32) -> (i32, i32, i32) {
    %c0_i32 = arith.constant 0 : i32
    %c0_i32_0 = arith.constant 0 : i32
    %c0_i32_1 = arith.constant 0 : i32
    %c0_i32_2 = arith.constant 0 : i32
    return %c0_i32, %c0_i32_0, %c0_i32_1 : i32, i32, i32
  }
  func.func @transform_5(%arg0: i32) -> (i32, i32) {
    %c0_i32 = arith.constant 0 : i32
    %c0_i32_0 = arith.constant 0 : i32
    %c0_i32_1 = arith.constant 0 : i32
    return %c0_i32, %c0_i32_0 : i32, i32
  }
  func.func @transform_6(%arg0: i32) -> (i32, i32, i32) {
    %c0_i32 = arith.constant 0 : i32
    %c0_i32_0 = arith.constant 0 : i32
    %c0_i32_1 = arith.constant 0 : i32
    %c0_i32_2 = arith.constant 0 : i32
    return %c0_i32, %c0_i32_0, %c0_i32_1 : i32, i32, i32
  }
  func.func @transform_7(%arg0: i32) -> (i32, i32) {
    %c0_i32 = arith.constant 0 : i32
    %c0_i32_0 = arith.constant 0 : i32
    %c0_i32_1 = arith.constant 0 : i32
    return %c0_i32, %c0_i32_0 : i32, i32
  }
  func.func @transform_8(%arg0: i32) -> (i32, i32, i32) {
    %c0_i32 = arith.constant 0 : i32
    %c0_i32_0 = arith.constant 0 : i32
    %c0_i32_1 = arith.constant 0 : i32
    return %arg0, %c0_i32, %c0_i32_0 : i32, i32, i32
  }
}

</mosaic_0001>

<llo_original>
// kernel: tile.9
$region0: #{tile.9}
  %s0 = inlined_call_operand.vmem [shape: s32[16,16], index: 0, kind: input, shape index: {}]
  %s1 = inlined_call_operand.vmem [shape: s32[1,256], index: 1, kind: output, shape index: {}]
  $region1: #{tile.9} parent=0
    #allocation0 [shape = 'u8[8192]{0}', space=vmem, size = 0x2000, scoped, tag = 'scoped mem for output reshape']
    %s2 = smov 3
    %v3 = vld [vmem:[%s0] ss:$8 sm:%s2]
    %vm4 = vcmask 130048
    %5 = vst.msk [vmem:[#allocation0] ss:$8 sm:$0x3] %vm4, %v3
    %s6 = scalar_lea.vmem %s0, 7
    %s7 = smov 3
    %v8 = vld [vmem:[%s6] ss:$8 sm:%s7]
    %9 = vrot.lane.b32.xlu0 %v8, 112
    %v10 = vpop.permute.xlu0 %9
    %vm11 = vcmask 1048448
    %12 = vst.msk [vmem:[#allocation0] ss:$8 sm:$0x3] %vm11, %v10
    %s13 = scalar_lea.vmem %s0, 6
    %s14 = smov 3
    %v15 = vld [vmem:[%s13] ss:$8 sm:%s14]
    %16 = vrot.lane.b32.xlu0 %v15, 96
    %v17 = vpop.permute.xlu0 %16
    %vm18 = vcmask 917248
    %19 = vst.msk [vmem:[#allocation0] ss:$8 sm:$0x3] %vm18, %v17
    %s20 = scalar_lea.vmem %s0, 5
    %s21 = smov 3
    %v22 = vld [vmem:[%s20] ss:$8 sm:%s21]
    %23 = vrot.lane.b32.xlu0 %v22, 80
    %v24 = vpop.permute.xlu0 %23
    %vm25 = vcmask 786048
    %26 = vst.msk [vmem:[#allocation0] ss:$8 sm:$0x3] %vm25, %v24
    %s27 = scalar_lea.vmem %s0, 4
    %s28 = smov 3
    %v29 = vld [vmem:[%s27] ss:$8 sm:%s28]
    %30 = vrot.lane.b32.xlu0 %v29, 64
    %v31 = vpop.permute.xlu0 %30
    %vm32 = vcmask 654848
    %33 = vst.msk [vmem:[#allocation0] ss:$8 sm:$0x3] %vm32, %v31
    %s34 = scalar_lea.vmem %s0, 3
    %s35 = smov 3
    %v36 = vld [vmem:[%s34] ss:$8 sm:%s35]
    %37 = vrot.lane.b32.xlu0 %v36, 48
    %v38 = vpop.permute.xlu0 %37
    %vm39 = vcmask 523648
    %40 = vst.msk [vmem:[#allocation0] ss:$8 sm:$0x3] %vm39, %v38
    %s41 = scalar_lea.vmem %s0, 2
    %s42 = smov 3
    %v43 = vld [vmem:[%s41] ss:$8 sm:%s42]
    %44 = vrot.lane.b32.xlu0 %v43, 32
    %v45 = vpop.permute.xlu0 %44
    %vm46 = vcmask 392448
    %47 = vst.msk [vmem:[#allocation0] ss:$8 sm:$0x3] %vm46, %v45
    %s48 = scalar_lea.vmem %s0, 1
    %s49 = smov 3
    %v50 = vld [vmem:[%s48] ss:$8 sm:%s49]
    %51 = vrot.lane.b32.xlu0 %v50, 16
    %v52 = vpop.permute.xlu0 %51
    %vm53 = vcmask 261248
    %54 = vst.msk [vmem:[#allocation0] ss:$8 sm:$0x3] %vm53, %v52
    %s56 = sshllo.u32 0, 1
    %v58 = vld [vmem:[#allocation0] sm:%s56]
    %s59 = sshllo.u32 0, 1
    %60 = vst [vmem:[%s1] sm:%s59] %v58
    %s61 = scalar_lea.vmem [#allocation0], 8
    %v62 = vld [vmem:[%s61] sm:%s56]
    %s63 = sshllo.u32 0, 1
    %s64 = scalar_lea.vmem %s1, 1
    %65 = vst [vmem:[%s64] sm:%s63] %v62

// kernel: shortcut_forward.1
$region0: #{shortcut_forward.1}
  #allocation0 [shape = 'u32[]', space=smem, size = 0x4, offset = 0x4, fixed_abs, tag = 'smem constant byte address 0x4 - core index']
  #allocation1 [shape = 'u32[144,128]{1,0:T(1,128)}', space=vmem, size = 0x12000, scoped, tag = 'internal scratch']
  %s0 = inlined_call_operand.vmem [shape: s32[2,256], index: 0, kind: input, shape index: {}]
  %s1 = inlined_call_operand.vmem [shape: f32[2,4,256], index: 1, kind: input, shape index: {}]
  %s2 = inlined_call_operand.vmem [shape: f32[9,8,4], index: 2, kind: input, shape index: {}]
  %s3 = inlined_call_operand.vmem [shape: f32[8,1], index: 3, kind: input, shape index: {}]
  %s4 = inlined_call_operand.vmem [shape: f32[9,8,8], index: 4, kind: input, shape index: {}]
  %s5 = inlined_call_operand.vmem [shape: f32[8,1], index: 5, kind: input, shape index: {}]
  %s6 = inlined_call_operand.vmem [shape: f32[1,8,8], index: 6, kind: input, shape index: {}]
  %s7 = inlined_call_operand.vmem [shape: f32[8,1], index: 7, kind: input, shape index: {}]
  %s8 = inlined_call_operand.vmem [shape: f32[2,8,256], index: 8, kind: output, shape index: {}]
  %s9 = sld [smem:[#allocation0]]
  $region65: #{shortcut_forward.1} parent=0
    _
  %s11 = ssub.s32 1, %s9
  %s12 = scalar_select 0, %s11, %s9
  loop: start=0, step=1, limit=4
  $region2: #{shortcut_forward.1} parent=0 // loop_pre_header
    _
  $region3: #{shortcut_forward.1} parent=0 // loop_header
    %s14 = sphi 0, %s18
    %p15 = scmp.ge.s32.totalorder %s14, 4
    %s22 = sphi 0, %s22
    %s24 = sphi 0, %s22
    %s25 = sphi 0, %s24
    %s39 = sphi 0, %s25
    %s45 = sphi 0, %s47
    %s48 = sphi 0, %s45
    %s49 = sphi 0, %s48
    %s65 = sphi 0, %s49
    %s69 = sphi 0, %s69
    %s71 = sphi 0, %s69
    %s72 = sphi 0, %s71
    %s86 = sphi 0, %s72
    %s90 = sphi 0, %s90
    %s92 = sphi 0, %s90
    %s93 = sphi 0, %s92
    %s107 = sphi 0, %s93
    %s111 = sphi 0, %s111
    %s113 = sphi 0, %s111
    %s114 = sphi 0, %s113
    %s128 = sphi 0, %s114
    %s132 = sphi 0, %s132
    %s134 = sphi 0, %s132
    %s135 = sphi 0, %s134
    %s149 = sphi 0, %s135
    %s153 = sphi 0, %s153
    %s155 = sphi 0, %s153
    %s156 = sphi 0, %s155
    %s170 = sphi 0, %s156
    %s174 = sphi 0, %s174
    %s176 = sphi 0, %s174
    %s177 = sphi 0, %s176
    %s191 = sphi 0, %s177
    %s197 = sphi 0, %s199
    %s200 = sphi 0, %s197
    %s201 = sphi 0, %s200
    %s217 = sphi 0, %s201
  $region4: #{shortcut_forward.1} parent=0 // loop_header_branch
    %17 = sbr.rel (%p15) target = $region8
  $region5: #{shortcut_forward.1} parent=0 // loop_body
    %s19 = ssub.s32 %s14, 1
    %s20 = ssub.s32 %s14, 2
    %s21 = sadd.s32 %s14, 1
    %s23 = sadd.s32 %s22, 1
    %p26 = scmp.eq.s32.totalorder %s14, 1
    %p27 = scmp.ne.s32.totalorder %s22, %s24
    %p28 = scmp.eq.s32.totalorder %s14, 0
    %p29 = por %p27, %p28
    %p30 = scmp.ne.s32.totalorder %s22, %s24
    %p31 = scmp.eq.s32.totalorder %s19, 1
    %p32 = por %p30, %p31
    %p33 = scmp.ne.s32.totalorder %s24, %s25
    %p34 = scmp.eq.s32.totalorder %s19, 0
    %p35 = por %p33, %p34
    %p36 = scmp.ne.s32.totalorder %s24, %s25
    %p37 = scmp.eq.s32.totalorder %s20, 1
    %p38 = por %p36, %p37
    %p40 = scmp.ne.s32.totalorder %s25, %s39
    %p41 = scmp.eq.s32.totalorder %s20, 0
    %p42 = por %p40, %p41
    %s43 = ssub.s32 %s14, %s21
    %p44 = scmp.eq.s32.totalorder %s43, 0
    %s46 = sadd.s32 %s45, 1
    %s47 = scalar_select %p44, %s45, %s46
    %p50 = pneg %p44
    %p51 = scmp.eq.s32.totalorder %s14, 1
    %p52 = por %p50, %p51
    %p53 = scmp.ne.s32.totalorder %s45, %s48
    %p54 = scmp.eq.s32.totalorder %s14, 0
    %p55 = por %p53, %p54
    %p56 = scmp.ne.s32.totalorder %s45, %s48
    %p57 = scmp.eq.s32.totalorder %s19, 1
    %p58 = por %p56, %p57
    %p59 = scmp.ne.s32.totalorder %s48, %s49
    %p60 = scmp.eq.s32.totalorder %s19, 0
    %p61 = por %p59, %p60
    %p62 = scmp.ne.s32.totalorder %s48, %s49
    %p63 = scmp.eq.s32.totalorder %s20, 1
    %p64 = por %p62, %p63
    %p66 = scmp.ne.s32.totalorder %s49, %s65
    %p67 = scmp.eq.s32.totalorder %s20, 0
    %p68 = por %p66, %p67
    %s70 = sadd.s32 %s69, 1
    %p73 = scmp.eq.s32.totalorder %s14, 1
    %p74 = scmp.ne.s32.totalorder %s69, %s71
    %p75 = scmp.eq.s32.totalorder %s14, 0
    %p76 = por %p74, %p75
    %p77 = scmp.ne.s32.totalorder %s69, %s71
    %p78 = scmp.eq.s32.totalorder %s19, 1
    %p79 = por %p77, %p78
    %p80 = scmp.ne.s32.totalorder %s71, %s72
    %p81 = scmp.eq.s32.totalorder %s19, 0
    %p82 = por %p80, %p81
    %p83 = scmp.ne.s32.totalorder %s71, %s72
    %p84 = scmp.eq.s32.totalorder %s20, 1
    %p85 = por %p83, %p84
    %p87 = scmp.ne.s32.totalorder %s72, %s86
    %p88 = scmp.eq.s32.totalorder %s20, 0
    %p89 = por %p87, %p88
    %s91 = sadd.s32 %s90, 1
    %p94 = scmp.eq.s32.totalorder %s14, 1
    %p95 = scmp.ne.s32.totalorder %s90, %s92
    %p96 = scmp.eq.s32.totalorder %s14, 0
    %p97 = por %p95, %p96
    %p98 = scmp.ne.s32.totalorder %s90, %s92
    %p99 = scmp.eq.s32.totalorder %s19, 1
    %p100 = por %p98, %p99
    %p101 = scmp.ne.s32.totalorder %s92, %s93
    %p102 = scmp.eq.s32.totalorder %s19, 0
    %p103 = por %p101, %p102
    %p104 = scmp.ne.s32.totalorder %s92, %s93
    %p105 = scmp.eq.s32.totalorder %s20, 1
    %p106 = por %p104, %p105
    %p108 = scmp.ne.s32.totalorder %s93, %s107
    %p109 = scmp.eq.s32.totalorder %s20, 0
    %p110 = por %p108, %p109
    %s112 = sadd.s32 %s111, 1
    %p115 = scmp.eq.s32.totalorder %s14, 1
    %p116 = scmp.ne.s32.totalorder %s111, %s113
    %p117 = scmp.eq.s32.totalorder %s14, 0
    %p118 = por %p116, %p117
    %p119 = scmp.ne.s32.totalorder %s111, %s113
    %p120 = scmp.eq.s32.totalorder %s19, 1
    %p121 = por %p119, %p120
    %p122 = scmp.ne.s32.totalorder %s113, %s114
    %p123 = scmp.eq.s32.totalorder %s19, 0
    %p124 = por %p122, %p123
    %p125 = scmp.ne.s32.totalorder %s113, %s114
    %p126 = scmp.eq.s32.totalorder %s20, 1
    %p127 = por %p125, %p126
    %p129 = scmp.ne.s32.totalorder %s114, %s128
    %p130 = scmp.eq.s32.totalorder %s20, 0
    %p131 = por %p129, %p130
    %s133 = sadd.s32 %s132, 1
    %p136 = scmp.eq.s32.totalorder %s14, 1
    %p137 = scmp.ne.s32.totalorder %s132, %s134
    %p138 = scmp.eq.s32.totalorder %s14, 0
    %p139 = por %p137, %p138
    %p140 = scmp.ne.s32.totalorder %s132, %s134
    %p141 = scmp.eq.s32.totalorder %s19, 1
    %p142 = por %p140, %p141
    %p143 = scmp.ne.s32.totalorder %s134, %s135
    %p144 = scmp.eq.s32.totalorder %s19, 0
    %p145 = por %p143, %p144
    %p146 = scmp.ne.s32.totalorder %s134, %s135
    %p147 = scmp.eq.s32.totalorder %s20, 1
    %p148 = por %p146, %p147
    %p150 = scmp.ne.s32.totalorder %s135, %s149
    %p151 = scmp.eq.s32.totalorder %s20, 0
    %p152 = por %p150, %p151
    %s154 = sadd.s32 %s153, 1
    %p157 = scmp.eq.s32.totalorder %s14, 1
    %p158 = scmp.ne.s32.totalorder %s153, %s155
    %p159 = scmp.eq.s32.totalorder %s14, 0
    %p160 = por %p158, %p159
    %p161 = scmp.ne.s32.totalorder %s153, %s155
    %p162 = scmp.eq.s32.totalorder %s19, 1
    %p163 = por %p161, %p162
    %p164 = scmp.ne.s32.totalorder %s155, %s156
    %p165 = scmp.eq.s32.totalorder %s19, 0
    %p166 = por %p164, %p165
    %p167 = scmp.ne.s32.totalorder %s155, %s156
    %p168 = scmp.eq.s32.totalorder %s20, 1
    %p169 = por %p167, %p168
    %p171 = scmp.ne.s32.totalorder %s156, %s170
    %p172 = scmp.eq.s32.totalorder %s20, 0
    %p173 = por %p171, %p172
    %s175 = sadd.s32 %s174, 1
    %p178 = scmp.eq.s32.totalorder %s14, 1
    %p179 = scmp.ne.s32.totalorder %s174, %s176
    %p180 = scmp.eq.s32.totalorder %s14, 0
    %p181 = por %p179, %p180
    %p182 = scmp.ne.s32.totalorder %s174, %s176
    %p183 = scmp.eq.s32.totalorder %s19, 1
    %p184 = por %p182, %p183
    %p185 = scmp.ne.s32.totalorder %s176, %s177
    %p186 = scmp.eq.s32.totalorder %s19, 0
    %p187 = por %p185, %p186
    %p188 = scmp.ne.s32.totalorder %s176, %s177
    %p189 = scmp.eq.s32.totalorder %s20, 1
    %p190 = por %p188, %p189
    %p192 = scmp.ne.s32.totalorder %s177, %s191
    %p193 = scmp.eq.s32.totalorder %s20, 0
    %p194 = por %p192, %p193
    %s195 = ssub.s32 %s14, %s21
    %p196 = scmp.eq.s32.totalorder %s195, 0
    %s198 = sadd.s32 %s197, 1
    %s199 = scalar_select %p196, %s197, %s198
    %p202 = pneg %p196
    %p203 = scmp.eq.s32.totalorder %s14, 1
    %p204 = por %p202, %p203
    %p205 = scmp.ne.s32.totalorder %s197, %s200
    %p206 = scmp.eq.s32.totalorder %s14, 0
    %p207 = por %p205, %p206
    %p208 = scmp.ne.s32.totalorder %s197, %s200
    %p209 = scmp.eq.s32.totalorder %s19, 1
    %p210 = por %p208, %p209
    %p211 = scmp.ne.s32.totalorder %s200, %s201
    %p212 = scmp.eq.s32.totalorder %s19, 0
    %p213 = por %p211, %p212
    %p214 = scmp.ne.s32.totalorder %s200, %s201
    %p215 = scmp.eq.s32.totalorder %s20, 1
    %p216 = por %p214, %p215
    %p218 = scmp.ne.s32.totalorder %s201, %s217
    %p219 = scmp.eq.s32.totalorder %s20, 0
    %p220 = por %p218, %p219
    %p221 = scmp.le.s32.totalorder 1, %s14
    %p222 = scmp.lt.s32.totalorder %s14, 3
    %p223 = pnand %p221, %p222
    %p224 = pneg %p223
    // Predicated region
    $region9: #{shortcut_forward.1} parent=5 // pred_check
      _
    $region10: #{shortcut_forward.1} parent=5 // pred_check_branch
      %226 = sbr.rel (%p223) target = $region12
    $region11: #{shortcut_forward.1} parent=5 // pred_region
      %s227 = ssub.s32 %s14, 1
      // Predicated region
      $region13: #{shortcut_forward.1} parent=11 // pred_check
        %p228 = pneg %p35
      $region14: #{shortcut_forward.1} parent=11 // pred_check_branch
        %230 = sbr.rel (%p228) target = $region16
      $region15: #{shortcut_forward.1} parent=11 // pred_region
        _
      $region16: #{shortcut_forward.1} parent=11 // pred_fallthru
        _
      // Predicated region
      $region17: #{shortcut_forward.1} parent=11 // pred_check
        %p231 = pneg %p82
      $region18: #{shortcut_forward.1} parent=11 // pred_check_branch
        %233 = sbr.rel (%p231) target = $region20
      $region19: #{shortcut_forward.1} parent=11 // pred_region
        _
      $region20: #{shortcut_forward.1} parent=11 // pred_fallthru
        _
      // Predicated region
      $region21: #{shortcut_forward.1} parent=11 // pred_check
        %p234 = pneg %p103
      $region22: #{shortcut_forward.1} parent=11 // pred_check_branch
        %236 = sbr.rel (%p234) target = $region24
      $region23: #{shortcut_forward.1} parent=11 // pred_region
        _
      $region24: #{shortcut_forward.1} parent=11 // pred_fallthru
        _
      // Predicated region
      $region25: #{shortcut_forward.1} parent=11 // pred_check
        %p237 = pneg %p124
      $region26: #{shortcut_forward.1} parent=11 // pred_check_branch
        %239 = sbr.rel (%p237) target = $region28
      $region27: #{shortcut_forward.1} parent=11 // pred_region
        _
      $region28: #{shortcut_forward.1} parent=11 // pred_fallthru
        _
      // Predicated region
      $region29: #{shortcut_forward.1} parent=11 // pred_check
        %p240 = pneg %p145
      $region30: #{shortcut_forward.1} parent=11 // pred_check_branch
        %242 = sbr.rel (%p240) target = $region32
      $region31: #{shortcut_forward.1} parent=11 // pred_region
        _
      $region32: #{shortcut_forward.1} parent=11 // pred_fallthru
        _
      // Predicated region
      $region33: #{shortcut_forward.1} parent=11 // pred_check
        %p243 = pneg %p166
      $region34: #{shortcut_forward.1} parent=11 // pred_check_branch
        %245 = sbr.rel (%p243) target = $region36
      $region35: #{shortcut_forward.1} parent=11 // pred_region
        _
      $region36: #{shortcut_forward.1} parent=11 // pred_fallthru
        _
      // Predicated region
      $region37: #{shortcut_forward.1} parent=11 // pred_check
        %p246 = pneg %p187
      $region38: #{shortcut_forward.1} parent=11 // pred_check_branch
        %248 = sbr.rel (%p246) target = $region40
      $region39: #{shortcut_forward.1} parent=11 // pred_region
        _
      $region40: #{shortcut_forward.1} parent=11 // pred_fallthru
        _
    $region12: #{shortcut_forward.1} parent=5 // pred_fallthru
      _
    %p249 = scmp.lt.s32.totalorder %s14, 2
    // Predicated region
    $region41: #{shortcut_forward.1} parent=5 // pred_check
      %p250 = pneg %p249
    $region42: #{shortcut_forward.1} parent=5 // pred_check_branch
      %252 = sbr.rel (%p250) target = $region44
    $region43: #{shortcut_forward.1} parent=5 // pred_region
      // Predicated region
      $region45: #{shortcut_forward.1} parent=43 // pred_check
        %p253 = pneg %p55
      $region46: #{shortcut_forward.1} parent=43 // pred_check_branch
        %255 = sbr.rel (%p253) target = $region48
      $region47: #{shortcut_forward.1} parent=43 // pred_region
        %p256 = scmp.lt.s32.totalorder %s14, 1
        %s257 = scalar_select %p256, %s14, 1
        %s258 = smul.addr %s257, 2
        %s259 = smul.addr %s258, 4
        %s260 = scalar_lea.vmem %s1, %s259
      $region48: #{shortcut_forward.1} parent=43 // pred_fallthru
        _
    $region44: #{shortcut_forward.1} parent=5 // pred_fallthru
      _
    %p261 = scmp.le.s32.totalorder 1, %s14
    %p262 = scmp.lt.s32.totalorder %s14, 3
    %p263 = pnand %p261, %p262
    %p264 = pneg %p263
    // Predicated region
    $region49: #{shortcut_forward.1} parent=5 // pred_check
      _
    $region50: #{shortcut_forward.1} parent=5 // pred_check_branch
      %266 = sbr.rel (%p263) target = $region52
    $region51: #{shortcut_forward.1} parent=5 // pred_region
      %s267 = ssub.s32 %s14, 1
      %p268 = pneg %p35
      %p269 = pneg %p32
      %p270 = scmp.lt.s32.totalorder %s19, 1
      %s271 = scalar_select %p270, %s19, 1
      %s272 = smul.addr %s271, 2
      %s273 = smul.addr %s272, 4
      %s274 = scalar_lea.vmem %s1, %s273
      %p275 = pneg %p61
      %p276 = pneg %p58
      %p277 = pneg %p82
      %p278 = pneg %p79
      %p279 = pneg %p103
      %p280 = pneg %p100
      %p281 = pneg %p124
      %p282 = pneg %p121
      %p283 = pneg %p145
      %p284 = pneg %p142
      %p285 = pneg %p166
      %p286 = pneg %p163
      %p287 = pneg %p187
      %p288 = pneg %p184
      %p289 = pneg %p213
      %p290 = pneg %p210
      %p291 = scmp.lt.s32.totalorder %s19, 1
      %s292 = scalar_select %p291, %s19, 1
      %s293 = smul.addr %s292, 2
      %s294 = smul.addr %s293, 8
      %s295 = scalar_lea.vmem %s8, %s294
      %p296 = scmp.lt.s32.totalorder %s19, 1
      %s297 = scalar_select %p296, %s19, 1
      %s298 = smul.addr %s297, 2
      %s299 = smul.addr %s298, 4
      %s300 = scalar_lea.vmem %s1, %s299
      %p301 = scmp.lt.s32.totalorder %s19, 1
      %s302 = scalar_select %p301, %s19, 1
      %s303 = smul.addr %s302, 2
      %s304 = smul.addr %s303, 8
      %s305 = scalar_lea.vmem %s8, %s304
      %v306 = vld [vmem:[%s0] ss:$2 sm:$0x3]
      %s307 = scalar_lea.vmem %s0, 1
      %v308 = vld [vmem:[%s307] ss:$2 sm:$0x3]
      %v309 = vld [vmem:[%s300] sm:$0xff]
      %v311 = vcombine.high %v309, %v309
      %313 = vrot.lane.b32.xlu0 %v309, 17
      %v314 = vpop.permute.xlu0 %313
      %315 = vrot.lane.b32.xlu0 %v311, 17
      %v316 = vpop.permute.xlu0 %315
      %v317 = vlaneseq
      %v318 = vand.u32 %v317, 127
      %vm319 = vcmp.lt.s32.totalorder %v318, 17
      %v320 = vsel %vm319, %v314, %v316
      %v321 = vsel %vm319, %v316, %v314
      %vm322 = vcmp.ge.s32.totalorder %v306, 1
      %vm323 = vcmp.ge.s32.totalorder %v308, 1
      %vm324 = vmand %vm322, %vm323
      %v325 = vsel %vm324, 1, 0
      %v326 = vlaneseq
      %v327 = vshrl.u32 %v326, 7
      %v328 = vsub.s32 0, %v327
      %v329 = vrot.slane %v325, %v328
      %v330 = vlaneseq
      %v331 = vshrl.u32 %v330, 7
      %v332 = vsub.s32 1, %v331
      %v333 = vrot.slane %v325, %v332
      %vm334 = vcmp.eq.s32.totalorder %v329, 1
      %vm335 = vcmp.eq.s32.totalorder %v333, 1
      %v336 = vsel %vm334, %v321, 0.0
      %v337 = vsel %vm335, %v320, 0.0
      %v338 = vld [vmem:[%s2] sm:$0xff]
      %339 = vrot.lane.b32.xlu0 %v309, 16
      %v340 = vpop.permute.xlu0 %339
      %341 = vrot.lane.b32.xlu0 %v311, 16
      %v342 = vpop.permute.xlu0 %341
      %vm343 = vcmp.lt.s32.totalorder %v318, 16
      %v344 = vsel %vm343, %v340, %v342
      %v345 = vsel %vm343, %v342, %v340
      %v346 = vsel %vm322, 1, 0
      %v347 = vlaneseq
      %v348 = vshrl.u32 %v347, 7
      %v349 = vsub.s32 0, %v348
      %v350 = vrot.slane %v346, %v349
      %v351 = vlaneseq
      %v352 = vshrl.u32 %v351, 7
      %v353 = vsub.s32 1, %v352
      %v354 = vrot.slane %v346, %v353
      %vm355 = vcmp.eq.s32.totalorder %v350, 1
      %vm356 = vcmp.eq.s32.totalorder %v354, 1
      %v357 = vsel %vm355, %v345, 0.0
      %v358 = vsel %vm356, %v344, 0.0
      %s359 = scalar_lea.vmem %s2, 8
      %v360 = vld [vmem:[%s359] sm:$0xff]
      %vm361 = vcmask 31744
      %v363 = vsel %vm361, %v360, 0
      %vm365 = vcmask 1043456
      %v367 = vsel %vm365, %v357, 0
      %v370 = vsel %vm365, %v358, 0
      %372 = vmatprep.subr.mxu0 %v370
      %373 = vmatpush1.msra.mxu0 %v367
      %374 = vmatprep.subr.mxu0 0.0
      %375 = vmatpush1.msra.mxu0 0.0
      %376 = vmatprep.subr.mxu0 0.0
      %377 = vmatpush1.msra.mxu0 0.0
      %378 = vmatprep.subr.mxu0 0.0
      %379 = vmatpush1.msra.mxu0 0.0
      %380 = vmatprep.subr.mxu0 0.0
      %381 = vmatpush1.msra.mxu0 0.0
      %382 = vmatprep.subr.mxu0 0.0
      %383 = vmatpush1.msra.mxu0 0.0
      %384 = vmatprep.subr.mxu0 0.0
      %385 = vmatpush1.msra.mxu0 0.0
      %386 = vmatprep.subr.mxu0 0.0
      %387 = vmatpush1.msra.mxu0 0.0
      %388 = vmatprep.subr.mxu0 0.0
      %389 = vmatpush1.msra.mxu0 0.0
      %390 = vmatprep.subr.mxu0 0.0
      %391 = vmatpush1.msra.mxu0 0.0
      %392 = vmatprep.subr.mxu0 0.0
      %393 = vmatpush1.msra.mxu0 0.0
      %394 = vmatprep.subr.mxu0 0.0
      %395 = vmatpush1.msra.mxu0 0.0
      %396 = vmatprep.subr.mxu0 0.0
      %397 = vmatpush1.msra.mxu0 0.0
      %398 = vmatprep.subr.mxu0 0.0
      %399 = vmatpush1.msra.mxu0 0.0
      %400 = vmatprep.subr.mxu0 0.0
      %401 = vmatpush1.msra.mxu0 0.0
      %402 = vmatprep.subr.mxu0 0.0
      %403 = vmatpush1.msra.mxu0 0.0
      %404 = vmatprep.subr.mxu0 0.0
      %405 = vmatpush1.msra.mxu0 0.0
      %406 = vmatprep.subr.mxu0 0.0
      %407 = vmatpush1.msra.mxu0 0.0
      %408 = vmatprep.subr.mxu0 0.0
      %409 = vmatpush1.msra.mxu0 0.0
      %410 = vmatprep.subr.mxu0 0.0
      %411 = vmatpush1.msra.mxu0 0.0
      %412 = vmatprep.subr.mxu0 0.0
      %413 = vmatpush1.msra.mxu0 0.0
      %414 = vmatprep.subr.mxu0 0.0
      %415 = vmatpush1.msra.mxu0 0.0
      %416 = vmatprep.subr.mxu0 0.0
      %417 = vmatpush1.msra.mxu0 0.0
      %418 = vmatprep.subr.mxu0 0.0
      %419 = vmatpush1.msra.mxu0 0.0
      %420 = vmatprep.subr.mxu0 0.0
      %421 = vmatpush1.msra.mxu0 0.0
      %422 = vmatprep.subr.mxu0 0.0
      %423 = vmatpush1.msra.mxu0 0.0
      %424 = vmatprep.subr.mxu0 0.0
      %425 = vmatpush1.msra.mxu0 0.0
      %426 = vmatprep.subr.mxu0 0.0
      %427 = vmatpush1.msra.mxu0 0.0
      %428 = vmatprep.subr.mxu0 0.0
      %429 = vmatpush1.msra.mxu0 0.0
      %430 = vmatprep.subr.mxu0 0.0
      %431 = vmatpush1.msra.mxu0 0.0
      %432 = vmatprep.subr.mxu0 0.0
      %433 = vmatpush1.msra.mxu0 0.0
      %434 = vmatprep.subr.mxu0 0.0
      %435 = vmatpush1.msra.mxu0 0.0
      %436 = vmatprep.mubr.f32.mxu0 0.0
      %437 = vmatmul.mubr.f32.gmra.mrb[0].mxu0 %v363
      %v438 = vpop.f32.mrb[0].mxu0
      %v439 = vadd.f32 0.0, %v438
      %v440 = vpop.f32.mrb[0].mxu0
      %v441 = vadd.f32 0.0, %v440
      %442 = vdwg.mxu0
      %v444 = vsel %vm361, %v338, 0
      %v447 = vsel %vm365, %v336, 0
      %v450 = vsel %vm365, %v337, 0
      %452 = vmatprep.subr.mxu0 %v450
      %453 = vmatpush1.msra.mxu0 %v447
      %454 = vmatprep.subr.mxu0 0.0
      %455 = vmatpush1.msra.mxu0 0.0
      %456 = vmatprep.subr.mxu0 0.0
      %457 = vmatpush1.msra.mxu0 0.0
      %458 = vmatprep.subr.mxu0 0.0
      %459 = vmatpush1.msra.mxu0 0.0
      %460 = vmatprep.subr.mxu0 0.0
      %461 = vmatpush1.msra.mxu0 0.0
      %462 = vmatprep.subr.mxu0 0.0
      %463 = vmatpush1.msra.mxu0 0.0
      %464 = vmatprep.subr.mxu0 0.0
      %465 = vmatpush1.msra.mxu0 0.0
      %466 = vmatprep.subr.mxu0 0.0
      %467 = vmatpush1.msra.mxu0 0.0
      %468 = vmatprep.subr.mxu0 0.0
      %469 = vmatpush1.msra.mxu0 0.0
      %470 = vmatprep.subr.mxu0 0.0
      %471 = vmatpush1.msra.mxu0 0.0
      %472 = vmatprep.subr.mxu0 0.0
      %473 = vmatpush1.msra.mxu0 0.0
      %474 = vmatprep.subr.mxu0 0.0
      %475 = vmatpush1.msra.mxu0 0.0
      %476 = vmatprep.subr.mxu0 0.0
      %477 = vmatpush1.msra.mxu0 0.0
      %478 = vmatprep.subr.mxu0 0.0
      %479 = vmatpush1.msra.mxu0 0.0
      %480 = vmatprep.subr.mxu0 0.0
      %481 = vmatpush1.msra.mxu0 0.0
      %482 = vmatprep.subr.mxu0 0.0
      %483 = vmatpush1.msra.mxu0 0.0
      %484 = vmatprep.subr.mxu0 0.0
      %485 = vmatpush1.msra.mxu0 0.0
      %486 = vmatprep.subr.mxu0 0.0
      %487 = vmatpush1.msra.mxu0 0.0
      %488 = vmatprep.subr.mxu0 0.0
      %489 = vmatpush1.msra.mxu0 0.0
      %490 = vmatprep.subr.mxu0 0.0
      %491 = vmatpush1.msra.mxu0 0.0
      %492 = vmatprep.subr.mxu0 0.0
      %493 = vmatpush1.msra.mxu0 0.0
      %494 = vmatprep.subr.mxu0 0.0
      %495 = vmatpush1.msra.mxu0 0.0
      %496 = vmatprep.subr.mxu0 0.0
      %497 = vmatpush1.msra.mxu0 0.0
      %498 = vmatprep.subr.mxu0 0.0
      %499 = vmatpush1.msra.mxu0 0.0
      %500 = vmatprep.subr.mxu0 0.0
      %501 = vmatpush1.msra.mxu0 0.0
      %502 = vmatprep.subr.mxu0 0.0
      %503 = vmatpush1.msra.mxu0 0.0
      %504 = vmatprep.subr.mxu0 0.0
      %505 = vmatpush1.msra.mxu0 0.0
      %506 = vmatprep.subr.mxu0 0.0
      %507 = vmatpush1.msra.mxu0 0.0
      %508 = vmatprep.subr.mxu0 0.0
      %509 = vmatpush1.msra.mxu0 0.0
      %510 = vmatprep.subr.mxu0 0.0
      %511 = vmatpush1.msra.mxu0 0.0
      %512 = vmatprep.subr.mxu0 0.0
      %513 = vmatpush1.msra.mxu0 0.0
      %514 = vmatprep.subr.mxu0 0.0
      %515 = vmatpush1.msra.mxu0 0.0
      %516 = vmatprep.mubr.f32.mxu0 0.0
      %517 = vmatmul.mubr.f32.gmra.mrb[0].mxu0 %v444
      %v518 = vpop.f32.mrb[0].mxu0
      %v519 = vadd.f32 %v439, %v518
      %v520 = vpop.f32.mrb[0].mxu0
      %v521 = vadd.f32 %v441, %v520
      %522 = vdwg.mxu0
      %523 = vrot.lane.b32.xlu0 %v309, 15
      %v524 = vpop.permute.xlu0 %523
      %525 = vrot.lane.b32.xlu0 %v311, 15
      %v526 = vpop.permute.xlu0 %525
      %vm527 = vcmp.lt.s32.totalorder %v318, 15
      %v528 = vsel %vm527, %v524, %v526
      %v529 = vsel %vm527, %v526, %v524
      %vm530 = vcmp.lt.s32.totalorder %v308, 15
      %vm531 = vmand %vm322, %vm530
      %v532 = vsel %vm531, 1, 0
      %v533 = vlaneseq
      %v534 = vshrl.u32 %v533, 7
      %v535 = vsub.s32 0, %v534
      %v536 = vrot.slane %v532, %v535
      %v537 = vlaneseq
      %v538 = vshrl.u32 %v537, 7
      %v539 = vsub.s32 1, %v538
      %v540 = vrot.slane %v532, %v539
      %vm541 = vcmp.eq.s32.totalorder %v536, 1
      %vm542 = vcmp.eq.s32.totalorder %v540, 1
      %v543 = vsel %vm541, %v529, 0.0
      %v544 = vsel %vm542, %v528, 0.0
      %s545 = scalar_lea.vmem %s2, 16
      %v546 = vld [vmem:[%s545] sm:$0xff]
      %v548 = vsel %vm361, %v546, 0
      %v551 = vsel %vm365, %v543, 0
      %v554 = vsel %vm365, %v544, 0
      %556 = vmatprep.subr.mxu0 %v554
      %557 = vmatpush1.msra.mxu0 %v551
      %558 = vmatprep.subr.mxu0 0.0
      %559 = vmatpush1.msra.mxu0 0.0
      %560 = vmatprep.subr.mxu0 0.0
      %561 = vmatpush1.msra.mxu0 0.0
      %562 = vmatprep.subr.mxu0 0.0
      %563 = vmatpush1.msra.mxu0 0.0
      %564 = vmatprep.subr.mxu0 0.0
      %565 = vmatpush1.msra.mxu0 0.0
      %566 = vmatprep.subr.mxu0 0.0
      %567 = vmatpush1.msra.mxu0 0.0
      %568 = vmatprep.subr.mxu0 0.0
      %569 = vmatpush1.msra.mxu0 0.0
      %570 = vmatprep.subr.mxu0 0.0
      %571 = vmatpush1.msra.mxu0 0.0
      %572 = vmatprep.subr.mxu0 0.0
      %573 = vmatpush1.msra.mxu0 0.0
      %574 = vmatprep.subr.mxu0 0.0
      %575 = vmatpush1.msra.mxu0 0.0
      %576 = vmatprep.subr.mxu0 0.0
      %577 = vmatpush1.msra.mxu0 0.0
      %578 = vmatprep.subr.mxu0 0.0
      %579 = vmatpush1.msra.mxu0 0.0
      %580 = vmatprep.subr.mxu0 0.0
      %581 = vmatpush1.msra.mxu0 0.0
      %582 = vmatprep.subr.mxu0 0.0
      %583 = vmatpush1.msra.mxu0 0.0
      %584 = vmatprep.subr.mxu0 0.0
      %585 = vmatpush1.msra.mxu0 0.0
      %586 = vmatprep.subr.mxu0 0.0
      %587 = vmatpush1.msra.mxu0 0.0
      %588 = vmatprep.subr.mxu0 0.0
      %589 = vmatpush1.msra.mxu0 0.0
      %590 = vmatprep.subr.mxu0 0.0
      %591 = vmatpush1.msra.mxu0 0.0
      %592 = vmatprep.subr.mxu0 0.0
      %593 = vmatpush1.msra.mxu0 0.0
      %594 = vmatprep.subr.mxu0 0.0
      %595 = vmatpush1.msra.mxu0 0.0
      %596 = vmatprep.subr.mxu0 0.0
      %597 = vmatpush1.msra.mxu0 0.0
      %598 = vmatprep.subr.mxu0 0.0
      %599 = vmatpush1.msra.mxu0 0.0
      %600 = vmatprep.subr.mxu0 0.0
      %601 = vmatpush1.msra.mxu0 0.0
      %602 = vmatprep.subr.mxu0 0.0
      %603 = vmatpush1.msra.mxu0 0.0
      %604 = vmatprep.subr.mxu0 0.0
      %605 = vmatpush1.msra.mxu0 0.0
      %606 = vmatprep.subr.mxu0 0.0
      %607 = vmatpush1.msra.mxu0 0.0
      %608 = vmatprep.subr.mxu0 0.0
      %609 = vmatpush1.msra.mxu0 0.0
      %610 = vmatprep.subr.mxu0 0.0
      %611 = vmatpush1.msra.mxu0 0.0
      %612 = vmatprep.subr.mxu0 0.0
      %613 = vmatpush1.msra.mxu0 0.0
      %614 = vmatprep.subr.mxu0 0.0
      %615 = vmatpush1.msra.mxu0 0.0
      %616 = vmatprep.subr.mxu0 0.0
      %617 = vmatpush1.msra.mxu0 0.0
      %618 = vmatprep.subr.mxu0 0.0
      %619 = vmatpush1.msra.mxu0 0.0
      %620 = vmatprep.mubr.f32.mxu0 0.0
      %621 = vmatmul.mubr.f32.gmra.mrb[0].mxu0 %v548
      %v622 = vpop.f32.mrb[0].mxu0
      %v623 = vadd.f32 0.0, %v622
      %v624 = vpop.f32.mrb[0].mxu0
      %v625 = vadd.f32 0.0, %v624
      %626 = vdwg.mxu0
      %v627 = vadd.f32 %v519, %v623
      %v628 = vadd.f32 %v521, %v625
      %629 = vrot.lane.b32.xlu0 %v309, 1
      %v630 = vpop.permute.xlu0 %629
      %631 = vrot.lane.b32.xlu0 %v311, 1
      %v632 = vpop.permute.xlu0 %631
      %vm633 = vcmp.lt.s32.totalorder %v318, 1
      %v634 = vsel %vm633, %v630, %v632
      %v635 = vsel %vm633, %v632, %v630
      %v636 = vsel %vm323, 1, 0
      %v637 = vlaneseq
      %v638 = vshrl.u32 %v637, 7
      %v639 = vsub.s32 0, %v638
      %v640 = vrot.slane %v636, %v639
      %v641 = vlaneseq
      %v642 = vshrl.u32 %v641, 7
      %v643 = vsub.s32 1, %v642
      %v644 = vrot.slane %v636, %v643
      %vm645 = vcmp.eq.s32.totalorder %v640, 1
      %vm646 = vcmp.eq.s32.totalorder %v644, 1
      %v647 = vsel %vm645, %v635, 0.0
      %v648 = vsel %vm646, %v634, 0.0
      %s649 = scalar_lea.vmem %s2, 24
      %v650 = vld [vmem:[%s649] sm:$0xff]
      %v652 = vsel %vm361, %v650, 0
      %v655 = vsel %vm365, %v647, 0
      %v658 = vsel %vm365, %v648, 0
      %660 = vmatprep.subr.mxu0 %v658
      %661 = vmatpush1.msra.mxu0 %v655
      %662 = vmatprep.subr.mxu0 0.0
      %663 = vmatpush1.msra.mxu0 0.0
      %664 = vmatprep.subr.mxu0 0.0
      %665 = vmatpush1.msra.mxu0 0.0
      %666 = vmatprep.subr.mxu0 0.0
      %667 = vmatpush1.msra.mxu0 0.0
      %668 = vmatprep.subr.mxu0 0.0
      %669 = vmatpush1.msra.mxu0 0.0
      %670 = vmatprep.subr.mxu0 0.0
      %671 = vmatpush1.msra.mxu0 0.0
      %672 = vmatprep.subr.mxu0 0.0
      %673 = vmatpush1.msra.mxu0 0.0
      %674 = vmatprep.subr.mxu0 0.0
      %675 = vmatpush1.msra.mxu0 0.0
      %676 = vmatprep.subr.mxu0 0.0
      %677 = vmatpush1.msra.mxu0 0.0
      %678 = vmatprep.subr.mxu0 0.0
      %679 = vmatpush1.msra.mxu0 0.0
      %680 = vmatprep.subr.mxu0 0.0
      %681 = vmatpush1.msra.mxu0 0.0
      %682 = vmatprep.subr.mxu0 0.0
      %683 = vmatpush1.msra.mxu0 0.0
      %684 = vmatprep.subr.mxu0 0.0
      %685 = vmatpush1.msra.mxu0 0.0
      %686 = vmatprep.subr.mxu0 0.0
      %687 = vmatpush1.msra.mxu0 0.0
      %688 = vmatprep.subr.mxu0 0.0
      %689 = vmatpush1.msra.mxu0 0.0
      %690 = vmatprep.subr.mxu0 0.0
      %691 = vmatpush1.msra.mxu0 0.0
      %692 = vmatprep.subr.mxu0 0.0
      %693 = vmatpush1.msra.mxu0 0.0
      %694 = vmatprep.subr.mxu0 0.0
      %695 = vmatpush1.msra.mxu0 0.0
      %696 = vmatprep.subr.mxu0 0.0
      %697 = vmatpush1.msra.mxu0 0.0
      %698 = vmatprep.subr.mxu0 0.0
      %699 = vmatpush1.msra.mxu0 0.0
      %700 = vmatprep.subr.mxu0 0.0
      %701 = vmatpush1.msra.mxu0 0.0
      %702 = vmatprep.subr.mxu0 0.0
      %703 = vmatpush1.msra.mxu0 0.0
      %704 = vmatprep.subr.mxu0 0.0
      %705 = vmatpush1.msra.mxu0 0.0
      %706 = vmatprep.subr.mxu0 0.0
      %707 = vmatpush1.msra.mxu0 0.0
      %708 = vmatprep.subr.mxu0 0.0
      %709 = vmatpush1.msra.mxu0 0.0
      %710 = vmatprep.subr.mxu0 0.0
      %711 = vmatpush1.msra.mxu0 0.0
      %712 = vmatprep.subr.mxu0 0.0
      %713 = vmatpush1.msra.mxu0 0.0
      %714 = vmatprep.subr.mxu0 0.0
      %715 = vmatpush1.msra.mxu0 0.0
      %716 = vmatprep.subr.mxu0 0.0
      %717 = vmatpush1.msra.mxu0 0.0
      %718 = vmatprep.subr.mxu0 0.0
      %719 = vmatpush1.msra.mxu0 0.0
      %720 = vmatprep.subr.mxu0 0.0
      %721 = vmatpush1.msra.mxu0 0.0
      %722 = vmatprep.subr.mxu0 0.0
      %723 = vmatpush1.msra.mxu0 0.0
      %724 = vmatprep.mubr.f32.mxu0 0.0
      %725 = vmatmul.mubr.f32.gmra.mrb[0].mxu0 %v652
      %v726 = vpop.f32.mrb[0].mxu0
      %v727 = vadd.f32 0.0, %v726
      %v728 = vpop.f32.mrb[0].mxu0
      %v729 = vadd.f32 0.0, %v728
      %730 = vdwg.mxu0
      %v731 = vadd.f32 %v627, %v727
      %v732 = vadd.f32 %v628, %v729
      %s733 = scalar_lea.vmem %s2, 32
      %v734 = vld [vmem:[%s733] sm:$0xff]
      %v736 = vsel %vm361, %v734, 0
      %v738 = vsel %vm365, %v309, 0
      %v740 = vsel %vm365, %v311, 0
      %742 = vmatprep.subr.mxu0 %v740
      %743 = vmatpush1.msra.mxu0 %v738
      %744 = vmatprep.subr.mxu0 0.0
      %745 = vmatpush1.msra.mxu0 0.0
      %746 = vmatprep.subr.mxu0 0.0
      %747 = vmatpush1.msra.mxu0 0.0
      %748 = vmatprep.subr.mxu0 0.0
      %749 = vmatpush1.msra.mxu0 0.0
      %750 = vmatprep.subr.mxu0 0.0
      %751 = vmatpush1.msra.mxu0 0.0
      %752 = vmatprep.subr.mxu0 0.0
      %753 = vmatpush1.msra.mxu0 0.0
      %754 = vmatprep.subr.mxu0 0.0
      %755 = vmatpush1.msra.mxu0 0.0
      %756 = vmatprep.subr.mxu0 0.0
      %757 = vmatpush1.msra.mxu0 0.0
      %758 = vmatprep.subr.mxu0 0.0
      %759 = vmatpush1.msra.mxu0 0.0
      %760 = vmatprep.subr.mxu0 0.0
      %761 = vmatpush1.msra.mxu0 0.0
      %762 = vmatprep.subr.mxu0 0.0
      %763 = vmatpush1.msra.mxu0 0.0
      %764 = vmatprep.subr.mxu0 0.0
      %765 = vmatpush1.msra.mxu0 0.0
      %766 = vmatprep.subr.mxu0 0.0
      %767 = vmatpush1.msra.mxu0 0.0
      %768 = vmatprep.subr.mxu0 0.0
      %769 = vmatpush1.msra.mxu0 0.0
      %770 = vmatprep.subr.mxu0 0.0
      %771 = vmatpush1.msra.mxu0 0.0
      %772 = vmatprep.subr.mxu0 0.0
      %773 = vmatpush1.msra.mxu0 0.0
      %774 = vmatprep.subr.mxu0 0.0
      %775 = vmatpush1.msra.mxu0 0.0
      %776 = vmatprep.subr.mxu0 0.0
      %777 = vmatpush1.msra.mxu0 0.0
      %778 = vmatprep.subr.mxu0 0.0
      %779 = vmatpush1.msra.mxu0 0.0
      %780 = vmatprep.subr.mxu0 0.0
      %781 = vmatpush1.msra.mxu0 0.0
      %782 = vmatprep.subr.mxu0 0.0
      %783 = vmatpush1.msra.mxu0 0.0
      %784 = vmatprep.subr.mxu0 0.0
      %785 = vmatpush1.msra.mxu0 0.0
      %786 = vmatprep.subr.mxu0 0.0
      %787 = vmatpush1.msra.mxu0 0.0
      %788 = vmatprep.subr.mxu0 0.0
      %789 = vmatpush1.msra.mxu0 0.0
      %790 = vmatprep.subr.mxu0 0.0
      %791 = vmatpush1.msra.mxu0 0.0
      %792 = vmatprep.subr.mxu0 0.0
      %793 = vmatpush1.msra.mxu0 0.0
      %794 = vmatprep.subr.mxu0 0.0
      %795 = vmatpush1.msra.mxu0 0.0
      %796 = vmatprep.subr.mxu0 0.0
      %797 = vmatpush1.msra.mxu0 0.0
      %798 = vmatprep.subr.mxu0 0.0
      %799 = vmatpush1.msra.mxu0 0.0
      %800 = vmatprep.subr.mxu0 0.0
      %801 = vmatpush1.msra.mxu0 0.0
      %802 = vmatprep.subr.mxu0 0.0
      %803 = vmatpush1.msra.mxu0 0.0
      %804 = vmatprep.subr.mxu0 0.0
      %805 = vmatpush1.msra.mxu0 0.0
      %806 = vmatprep.mubr.f32.mxu0 0.0
      %807 = vmatmul.mubr.f32.gmra.mrb[0].mxu0 %v736
      %v808 = vpop.f32.mrb[0].mxu0
      %v809 = vadd.f32 0.0, %v808
      %v810 = vpop.f32.mrb[0].mxu0
      %v811 = vadd.f32 0.0, %v810
      %812 = vdwg.mxu0
      %v813 = vadd.f32 %v731, %v809
      %v814 = vadd.f32 %v732, %v811
      %815 = vrot.lane.b32.xlu0 %v309, 127
      %v816 = vpop.permute.xlu0 %815
      %817 = vrot.lane.b32.xlu0 %v311, 127
      %v818 = vpop.permute.xlu0 %817
      %vm819 = vcmp.lt.s32.totalorder %v318, 127
      %v820 = vsel %vm819, %v816, %v818
      %v821 = vsel %vm819, %v818, %v816
      %v822 = vsel %vm530, 1, 0
      %v823 = vlaneseq
      %v824 = vshrl.u32 %v823, 7
      %v825 = vsub.s32 0, %v824
      %v826 = vrot.slane %v822, %v825
      %v827 = vlaneseq
      %v828 = vshrl.u32 %v827, 7
      %v829 = vsub.s32 1, %v828
      %v830 = vrot.slane %v822, %v829
      %vm831 = vcmp.eq.s32.totalorder %v826, 1
      %vm832 = vcmp.eq.s32.totalorder %v830, 1
      %v833 = vsel %vm831, %v820, 0.0
      %v834 = vsel %vm832, %v821, 0.0
      %s835 = scalar_lea.vmem %s2, 40
      %v836 = vld [vmem:[%s835] sm:$0xff]
      %v838 = vsel %vm361, %v836, 0
      %v841 = vsel %vm365, %v833, 0
      %v844 = vsel %vm365, %v834, 0
      %846 = vmatprep.subr.mxu0 %v844
      %847 = vmatpush1.msra.mxu0 %v841
      %848 = vmatprep.subr.mxu0 0.0
      %849 = vmatpush1.msra.mxu0 0.0
      %850 = vmatprep.subr.mxu0 0.0
      %851 = vmatpush1.msra.mxu0 0.0
      %852 = vmatprep.subr.mxu0 0.0
      %853 = vmatpush1.msra.mxu0 0.0
      %854 = vmatprep.subr.mxu0 0.0
      %855 = vmatpush1.msra.mxu0 0.0
      %856 = vmatprep.subr.mxu0 0.0
      %857 = vmatpush1.msra.mxu0 0.0
      %858 = vmatprep.subr.mxu0 0.0
      %859 = vmatpush1.msra.mxu0 0.0
      %860 = vmatprep.subr.mxu0 0.0
      %861 = vmatpush1.msra.mxu0 0.0
      %862 = vmatprep.subr.mxu0 0.0
      %863 = vmatpush1.msra.mxu0 0.0
      %864 = vmatprep.subr.mxu0 0.0
      %865 = vmatpush1.msra.mxu0 0.0
      %866 = vmatprep.subr.mxu0 0.0
      %867 = vmatpush1.msra.mxu0 0.0
      %868 = vmatprep.subr.mxu0 0.0
      %869 = vmatpush1.msra.mxu0 0.0
      %870 = vmatprep.subr.mxu0 0.0
      %871 = vmatpush1.msra.mxu0 0.0
      %872 = vmatprep.subr.mxu0 0.0
      %873 = vmatpush1.msra.mxu0 0.0
      %874 = vmatprep.subr.mxu0 0.0
      %875 = vmatpush1.msra.mxu0 0.0
      %876 = vmatprep.subr.mxu0 0.0
      %877 = vmatpush1.msra.mxu0 0.0
      %878 = vmatprep.subr.mxu0 0.0
      %879 = vmatpush1.msra.mxu0 0.0
      %880 = vmatprep.subr.mxu0 0.0
      %881 = vmatpush1.msra.mxu0 0.0
      %882 = vmatprep.subr.mxu0 0.0
      %883 = vmatpush1.msra.mxu0 0.0
      %884 = vmatprep.subr.mxu0 0.0
      %885 = vmatpush1.msra.mxu0 0.0
      %886 = vmatprep.subr.mxu0 0.0
      %887 = vmatpush1.msra.mxu0 0.0
      %888 = vmatprep.subr.mxu0 0.0
      %889 = vmatpush1.msra.mxu0 0.0
      %890 = vmatprep.subr.mxu0 0.0
      %891 = vmatpush1.msra.mxu0 0.0
      %892 = vmatprep.subr.mxu0 0.0
      %893 = vmatpush1.msra.mxu0 0.0
      %894 = vmatprep.subr.mxu0 0.0
      %895 = vmatpush1.msra.mxu0 0.0
      %896 = vmatprep.subr.mxu0 0.0
      %897 = vmatpush1.msra.mxu0 0.0
      %898 = vmatprep.subr.mxu0 0.0
      %899 = vmatpush1.msra.mxu0 0.0
      %900 = vmatprep.subr.mxu0 0.0
      %901 = vmatpush1.msra.mxu0 0.0
      %902 = vmatprep.subr.mxu0 0.0
      %903 = vmatpush1.msra.mxu0 0.0
      %904 = vmatprep.subr.mxu0 0.0
      %905 = vmatpush1.msra.mxu0 0.0
      %906 = vmatprep.subr.mxu0 0.0
      %907 = vmatpush1.msra.mxu0 0.0
      %908 = vmatprep.subr.mxu0 0.0
      %909 = vmatpush1.msra.mxu0 0.0
      %910 = vmatprep.mubr.f32.mxu0 0.0
      %911 = vmatmul.mubr.f32.gmra.mrb[0].mxu0 %v838
      %v912 = vpop.f32.mrb[0].mxu0
      %v913 = vadd.f32 0.0, %v912
      %v914 = vpop.f32.mrb[0].mxu0
      %v915 = vadd.f32 0.0, %v914
      %916 = vdwg.mxu0
      %v917 = vadd.f32 %v813, %v913
      %v918 = vadd.f32 %v814, %v915
      %919 = vrot.lane.b32.xlu0 %v309, 113
      %v920 = vpop.permute.xlu0 %919
      %921 = vrot.lane.b32.xlu0 %v311, 113
      %v922 = vpop.permute.xlu0 %921
      %vm923 = vcmp.lt.s32.totalorder %v318, 113
      %v924 = vsel %vm923, %v920, %v922
      %v925 = vsel %vm923, %v922, %v920
      %vm926 = vcmp.lt.s32.totalorder %v306, 15
      %vm927 = vmand %vm926, %vm323
      %v928 = vsel %vm927, 1, 0
      %v929 = vlaneseq
      %v930 = vshrl.u32 %v929, 7
      %v931 = vsub.s32 0, %v930
      %v932 = vrot.slane %v928, %v931
      %v933 = vlaneseq
      %v934 = vshrl.u32 %v933, 7
      %v935 = vsub.s32 1, %v934
      %v936 = vrot.slane %v928, %v935
      %vm937 = vcmp.eq.s32.totalorder %v932, 1
      %vm938 = vcmp.eq.s32.totalorder %v936, 1
      %v939 = vsel %vm937, %v924, 0.0
      %v940 = vsel %vm938, %v925, 0.0
      %s941 = scalar_lea.vmem %s2, 48
      %v942 = vld [vmem:[%s941] sm:$0xff]
      %v944 = vsel %vm361, %v942, 0
      %v947 = vsel %vm365, %v939, 0
      %v950 = vsel %vm365, %v940, 0
      %952 = vmatprep.subr.mxu0 %v950
      %953 = vmatpush1.msra.mxu0 %v947
      %954 = vmatprep.subr.mxu0 0.0
      %955 = vmatpush1.msra.mxu0 0.0
      %956 = vmatprep.subr.mxu0 0.0
      %957 = vmatpush1.msra.mxu0 0.0
      %958 = vmatprep.subr.mxu0 0.0
      %959 = vmatpush1.msra.mxu0 0.0
      %960 = vmatprep.subr.mxu0 0.0
      %961 = vmatpush1.msra.mxu0 0.0
      %962 = vmatprep.subr.mxu0 0.0
      %963 = vmatpush1.msra.mxu0 0.0
      %964 = vmatprep.subr.mxu0 0.0
      %965 = vmatpush1.msra.mxu0 0.0
      %966 = vmatprep.subr.mxu0 0.0
      %967 = vmatpush1.msra.mxu0 0.0
      %968 = vmatprep.subr.mxu0 0.0
      %969 = vmatpush1.msra.mxu0 0.0
      %970 = vmatprep.subr.mxu0 0.0
      %971 = vmatpush1.msra.mxu0 0.0
      %972 = vmatprep.subr.mxu0 0.0
      %973 = vmatpush1.msra.mxu0 0.0
      %974 = vmatprep.subr.mxu0 0.0
      %975 = vmatpush1.msra.mxu0 0.0
      %976 = vmatprep.subr.mxu0 0.0
      %977 = vmatpush1.msra.mxu0 0.0
      %978 = vmatprep.subr.mxu0 0.0
      %979 = vmatpush1.msra.mxu0 0.0
      %980 = vmatprep.subr.mxu0 0.0
      %981 = vmatpush1.msra.mxu0 0.0
      %982 = vmatprep.subr.mxu0 0.0
      %983 = vmatpush1.msra.mxu0 0.0
      %984 = vmatprep.subr.mxu0 0.0
      %985 = vmatpush1.msra.mxu0 0.0
      %986 = vmatprep.subr.mxu0 0.0
      %987 = vmatpush1.msra.mxu0 0.0
      %988 = vmatprep.subr.mxu0 0.0
      %989 = vmatpush1.msra.mxu0 0.0
      %990 = vmatprep.subr.mxu0 0.0
      %991 = vmatpush1.msra.mxu0 0.0
      %992 = vmatprep.subr.mxu0 0.0
      %993 = vmatpush1.msra.mxu0 0.0
      %994 = vmatprep.subr.mxu0 0.0
      %995 = vmatpush1.msra.mxu0 0.0
      %996 = vmatprep.subr.mxu0 0.0
      %997 = vmatpush1.msra.mxu0 0.0
      %998 = vmatprep.subr.mxu0 0.0
      %999 = vmatpush1.msra.mxu0 0.0
      %1000 = vmatprep.subr.mxu0 0.0
      %1001 = vmatpush1.msra.mxu0 0.0
      %1002 = vmatprep.subr.mxu0 0.0
      %1003 = vmatpush1.msra.mxu0 0.0
      %1004 = vmatprep.subr.mxu0 0.0
      %1005 = vmatpush1.msra.mxu0 0.0
      %1006 = vmatprep.subr.mxu0 0.0
      %1007 = vmatpush1.msra.mxu0 0.0
      %1008 = vmatprep.subr.mxu0 0.0
      %1009 = vmatpush1.msra.mxu0 0.0
      %1010 = vmatprep.subr.mxu0 0.0
      %1011 = vmatpush1.msra.mxu0 0.0
      %1012 = vmatprep.subr.mxu0 0.0
      %1013 = vmatpush1.msra.mxu0 0.0
      %1014 = vmatprep.subr.mxu0 0.0
      %1015 = vmatpush1.msra.mxu0 0.0
      %1016 = vmatprep.mubr.f32.mxu0 0.0
      %1017 = vmatmul.mubr.f32.gmra.mrb[0].mxu0 %v944
      %v1018 = vpop.f32.mrb[0].mxu0
      %v1019 = vadd.f32 0.0, %v1018
      %v1020 = vpop.f32.mrb[0].mxu0
      %v1021 = vadd.f32 0.0, %v1020
      %1022 = vdwg.mxu0
      %v1023 = vadd.f32 %v917, %v1019
      %v1024 = vadd.f32 %v918, %v1021
      %1025 = vrot.lane.b32.xlu0 %v309, 112
      %v1026 = vpop.permute.xlu0 %1025
      %1027 = vrot.lane.b32.xlu0 %v311, 112
      %v1028 = vpop.permute.xlu0 %1027
      %vm1029 = vcmp.lt.s32.totalorder %v318, 112
      %v1030 = vsel %vm1029, %v1026, %v1028
      %v1031 = vsel %vm1029, %v1028, %v1026
      %v1032 = vsel %vm926, 1, 0
      %v1033 = vlaneseq
      %v1034 = vshrl.u32 %v1033, 7
      %v1035 = vsub.s32 0, %v1034
      %v1036 = vrot.slane %v1032, %v1035
      %v1037 = vlaneseq
      %v1038 = vshrl.u32 %v1037, 7
      %v1039 = vsub.s32 1, %v1038
      %v1040 = vrot.slane %v1032, %v1039
      %vm1041 = vcmp.eq.s32.totalorder %v1036, 1
      %vm1042 = vcmp.eq.s32.totalorder %v1040, 1
      %v1043 = vsel %vm1041, %v1030, 0.0
      %v1044 = vsel %vm1042, %v1031, 0.0
      %s1045 = scalar_lea.vmem %s2, 56
      %v1046 = vld [vmem:[%s1045] sm:$0xff]
      %v1048 = vsel %vm361, %v1046, 0
      %v1051 = vsel %vm365, %v1043, 0
      %v1054 = vsel %vm365, %v1044, 0
      %1056 = vmatprep.subr.mxu0 %v1054
      %1057 = vmatpush1.msra.mxu0 %v1051
      %1058 = vmatprep.subr.mxu0 0.0
      %1059 = vmatpush1.msra.mxu0 0.0
      %1060 = vmatprep.subr.mxu0 0.0
      %1061 = vmatpush1.msra.mxu0 0.0
      %1062 = vmatprep.subr.mxu0 0.0
      %1063 = vmatpush1.msra.mxu0 0.0
      %1064 = vmatprep.subr.mxu0 0.0
      %1065 = vmatpush1.msra.mxu0 0.0
      %1066 = vmatprep.subr.mxu0 0.0
      %1067 = vmatpush1.msra.mxu0 0.0
      %1068 = vmatprep.subr.mxu0 0.0
      %1069 = vmatpush1.msra.mxu0 0.0
      %1070 = vmatprep.subr.mxu0 0.0
      %1071 = vmatpush1.msra.mxu0 0.0
      %1072 = vmatprep.subr.mxu0 0.0
      %1073 = vmatpush1.msra.mxu0 0.0
      %1074 = vmatprep.subr.mxu0 0.0
      %1075 = vmatpush1.msra.mxu0 0.0
      %1076 = vmatprep.subr.mxu0 0.0
      %1077 = vmatpush1.msra.mxu0 0.0
      %1078 = vmatprep.subr.mxu0 0.0
      %1079 = vmatpush1.msra.mxu0 0.0
      %1080 = vmatprep.subr.mxu0 0.0
      %1081 = vmatpush1.msra.mxu0 0.0
      %1082 = vmatprep.subr.mxu0 0.0
      %1083 = vmatpush1.msra.mxu0 0.0
      %1084 = vmatprep.subr.mxu0 0.0
      %1085 = vmatpush1.msra.mxu0 0.0
      %1086 = vmatprep.subr.mxu0 0.0
      %1087 = vmatpush1.msra.mxu0 0.0
      %1088 = vmatprep.subr.mxu0 0.0
      %1089 = vmatpush1.msra.mxu0 0.0
      %1090 = vmatprep.subr.mxu0 0.0
      %1091 = vmatpush1.msra.mxu0 0.0
      %1092 = vmatprep.subr.mxu0 0.0
      %1093 = vmatpush1.msra.mxu0 0.0
      %1094 = vmatprep.subr.mxu0 0.0
      %1095 = vmatpush1.msra.mxu0 0.0
      %1096 = vmatprep.subr.mxu0 0.0
      %1097 = vmatpush1.msra.mxu0 0.0
      %1098 = vmatprep.subr.mxu0 0.0
      %1099 = vmatpush1.msra.mxu0 0.0
      %1100 = vmatprep.subr.mxu0 0.0
      %1101 = vmatpush1.msra.mxu0 0.0
      %1102 = vmatprep.subr.mxu0 0.0
      %1103 = vmatpush1.msra.mxu0 0.0
      %1104 = vmatprep.subr.mxu0 0.0
      %1105 = vmatpush1.msra.mxu0 0.0
      %1106 = vmatprep.subr.mxu0 0.0
      %1107 = vmatpush1.msra.mxu0 0.0
      %1108 = vmatprep.subr.mxu0 0.0
      %1109 = vmatpush1.msra.mxu0 0.0
      %1110 = vmatprep.subr.mxu0 0.0
      %1111 = vmatpush1.msra.mxu0 0.0
      %1112 = vmatprep.subr.mxu0 0.0
      %1113 = vmatpush1.msra.mxu0 0.0
      %1114 = vmatprep.subr.mxu0 0.0
      %1115 = vmatpush1.msra.mxu0 0.0
      %1116 = vmatprep.subr.mxu0 0.0
      %1117 = vmatpush1.msra.mxu0 0.0
      %1118 = vmatprep.subr.mxu0 0.0
      %1119 = vmatpush1.msra.mxu0 0.0
      %1120 = vmatprep.mubr.f32.mxu0 0.0
      %1121 = vmatmul.mubr.f32.gmra.mrb[0].mxu0 %v1048
      %v1122 = vpop.f32.mrb[0].mxu0
      %v1123 = vadd.f32 0.0, %v1122
      %v1124 = vpop.f32.mrb[0].mxu0
      %v1125 = vadd.f32 0.0, %v1124
      %1126 = vdwg.mxu0
      %v1127 = vadd.f32 %v1023, %v1123
      %v1128 = vadd.f32 %v1024, %v1125
      %1129 = vrot.lane.b32.xlu0 %v309, 111
      %v1130 = vpop.permute.xlu0 %1129
      %1131 = vrot.lane.b32.xlu0 %v311, 111
      %v1132 = vpop.permute.xlu0 %1131
      %vm1133 = vcmp.lt.s32.totalorder %v318, 111
      %v1134 = vsel %vm1133, %v1130, %v1132
      %v1135 = vsel %vm1133, %v1132, %v1130
      %vm1136 = vmand %vm926, %vm530
      %v1137 = vsel %vm1136, 1, 0
      %v1138 = vlaneseq
      %v1139 = vshrl.u32 %v1138, 7
      %v1140 = vsub.s32 0, %v1139
      %v1141 = vrot.slane %v1137, %v1140
      %v1142 = vlaneseq
      %v1143 = vshrl.u32 %v1142, 7
      %v1144 = vsub.s32 1, %v1143
      %v1145 = vrot.slane %v1137, %v1144
      %vm1146 = vcmp.eq.s32.totalorder %v1141, 1
      %vm1147 = vcmp.eq.s32.totalorder %v1145, 1
      %v1148 = vsel %vm1146, %v1134, 0.0
      %v1149 = vsel %vm1147, %v1135, 0.0
      %s1150 = scalar_lea.vmem %s2, 64
      %v1151 = vld [vmem:[%s1150] sm:$0xff]
      %v1153 = vsel %vm361, %v1151, 0
      %v1156 = vsel %vm365, %v1148, 0
      %v1159 = vsel %vm365, %v1149, 0
      %1161 = vmatprep.subr.mxu0 %v1159
      %1162 = vmatpush1.msra.mxu0 %v1156
      %1163 = vmatprep.subr.mxu0 0.0
      %1164 = vmatpush1.msra.mxu0 0.0
      %1165 = vmatprep.subr.mxu0 0.0
      %1166 = vmatpush1.msra.mxu0 0.0
      %1167 = vmatprep.subr.mxu0 0.0
      %1168 = vmatpush1.msra.mxu0 0.0
      %1169 = vmatprep.subr.mxu0 0.0
      %1170 = vmatpush1.msra.mxu0 0.0
      %1171 = vmatprep.subr.mxu0 0.0
      %1172 = vmatpush1.msra.mxu0 0.0
      %1173 = vmatprep.subr.mxu0 0.0
      %1174 = vmatpush1.msra.mxu0 0.0
      %1175 = vmatprep.subr.mxu0 0.0
      %1176 = vmatpush1.msra.mxu0 0.0
      %1177 = vmatprep.subr.mxu0 0.0
      %1178 = vmatpush1.msra.mxu0 0.0
      %1179 = vmatprep.subr.mxu0 0.0
      %1180 = vmatpush1.msra.mxu0 0.0
      %1181 = vmatprep.subr.mxu0 0.0
      %1182 = vmatpush1.msra.mxu0 0.0
      %1183 = vmatprep.subr.mxu0 0.0
      %1184 = vmatpush1.msra.mxu0 0.0
      %1185 = vmatprep.subr.mxu0 0.0
      %1186 = vmatpush1.msra.mxu0 0.0
      %1187 = vmatprep.subr.mxu0 0.0
      %1188 = vmatpush1.msra.mxu0 0.0
      %1189 = vmatprep.subr.mxu0 0.0
      %1190 = vmatpush1.msra.mxu0 0.0
      %1191 = vmatprep.subr.mxu0 0.0
      %1192 = vmatpush1.msra.mxu0 0.0
      %1193 = vmatprep.subr.mxu0 0.0
      %1194 = vmatpush1.msra.mxu0 0.0
      %1195 = vmatprep.subr.mxu0 0.0
      %1196 = vmatpush1.msra.mxu0 0.0
      %1197 = vmatprep.subr.mxu0 0.0
      %1198 = vmatpush1.msra.mxu0 0.0
      %1199 = vmatprep.subr.mxu0 0.0
      %1200 = vmatpush1.msra.mxu0 0.0
      %1201 = vmatprep.subr.mxu0 0.0
      %1202 = vmatpush1.msra.mxu0 0.0
      %1203 = vmatprep.subr.mxu0 0.0
      %1204 = vmatpush1.msra.mxu0 0.0
      %1205 = vmatprep.subr.mxu0 0.0
      %1206 = vmatpush1.msra.mxu0 0.0
      %1207 = vmatprep.subr.mxu0 0.0
      %1208 = vmatpush1.msra.mxu0 0.0
      %1209 = vmatprep.subr.mxu0 0.0
      %1210 = vmatpush1.msra.mxu0 0.0
      %1211 = vmatprep.subr.mxu0 0.0
      %1212 = vmatpush1.msra.mxu0 0.0
      %1213 = vmatprep.subr.mxu0 0.0
      %1214 = vmatpush1.msra.mxu0 0.0
      %1215 = vmatprep.subr.mxu0 0.0
      %1216 = vmatpush1.msra.mxu0 0.0
      %1217 = vmatprep.subr.mxu0 0.0
      %1218 = vmatpush1.msra.mxu0 0.0
      %1219 = vmatprep.subr.mxu0 0.0
      %1220 = vmatpush1.msra.mxu0 0.0
      %1221 = vmatprep.subr.mxu0 0.0
      %1222 = vmatpush1.msra.mxu0 0.0
      %1223 = vmatprep.subr.mxu0 0.0
      %1224 = vmatpush1.msra.mxu0 0.0
      %1225 = vmatprep.mubr.f32.mxu0 0.0
      %1226 = vmatmul.mubr.f32.gmra.mrb[0].mxu0 %v1153
      %v1227 = vpop.f32.mrb[0].mxu0
      %v1228 = vadd.f32 0.0, %v1227
      %v1229 = vpop.f32.mrb[0].mxu0
      %v1230 = vadd.f32 0.0, %v1229
      %1231 = vdwg.mxu0
      %v1232 = vadd.f32 %v1127, %v1228
      %v1233 = vadd.f32 %v1128, %v1230
      %v1234 = vld [vmem:[%s3] sm:$0xff]
      %1236 = vset.pattern.permute.xlu0 0
      %1237 = vperm.xlu0 %1236, %v1234
      %v1238 = vpop.permute.xlu0 %1237
      %v1240 = vadd.f32 %v1232, %v1238
      %v1241 = vadd.f32 %v1233, %v1238
      %v1242 = vmax.f32 %v1240, 0.0
      %v1243 = vmax.f32 %v1241, 0.0
      %1244 = vrot.lane.b32.xlu0 %v1242, 17
      %v1245 = vpop.permute.xlu0 %1244
      %1246 = vrot.lane.b32.xlu0 %v1243, 17
      %v1247 = vpop.permute.xlu0 %1246
      %v1248 = vsel %vm319, %v1245, %v1247
      %v1249 = vsel %vm319, %v1247, %v1245
      %v1250 = vsel %vm334, %v1249, 0.0
      %v1251 = vsel %vm335, %v1248, 0.0
      %v1252 = vld [vmem:[%s4] sm:$0xff]
      %1253 = vrot.lane.b32.xlu0 %v1242, 16
      %v1254 = vpop.permute.xlu0 %1253
      %1255 = vrot.lane.b32.xlu0 %v1243, 16
      %v1256 = vpop.permute.xlu0 %1255
      %v1257 = vsel %vm343, %v1254, %v1256
      %v1258 = vsel %vm343, %v1256, %v1254
      %v1259 = vsel %vm355, %v1258, 0.0
      %v1260 = vsel %vm356, %v1257, 0.0
      %s1261 = scalar_lea.vmem %s4, 8
      %v1262 = vld [vmem:[%s1261] sm:$0xff]
      %vm1263 = vcmask 64512
      %v1265 = vsel %vm1263, %v1262, 0
      %1267 = vmatprep.subr.mxu0 %v1260
      %1268 = vmatpush1.msra.mxu0 %v1259
      %1269 = vmatprep.subr.mxu0 0.0
      %1270 = vmatpush1.msra.mxu0 0.0
      %1271 = vmatprep.subr.mxu0 0.0
      %1272 = vmatpush1.msra.mxu0 0.0
      %1273 = vmatprep.subr.mxu0 0.0
      %1274 = vmatpush1.msra.mxu0 0.0
      %1275 = vmatprep.subr.mxu0 0.0
      %1276 = vmatpush1.msra.mxu0 0.0
      %1277 = vmatprep.subr.mxu0 0.0
      %1278 = vmatpush1.msra.mxu0 0.0
      %1279 = vmatprep.subr.mxu0 0.0
      %1280 = vmatpush1.msra.mxu0 0.0
      %1281 = vmatprep.subr.mxu0 0.0
      %1282 = vmatpush1.msra.mxu0 0.0
      %1283 = vmatprep.subr.mxu0 0.0
      %1284 = vmatpush1.msra.mxu0 0.0
      %1285 = vmatprep.subr.mxu0 0.0
      %1286 = vmatpush1.msra.mxu0 0.0
      %1287 = vmatprep.subr.mxu0 0.0
      %1288 = vmatpush1.msra.mxu0 0.0
      %1289 = vmatprep.subr.mxu0 0.0
      %1290 = vmatpush1.msra.mxu0 0.0
      %1291 = vmatprep.subr.mxu0 0.0
      %1292 = vmatpush1.msra.mxu0 0.0
      %1293 = vmatprep.subr.mxu0 0.0
      %1294 = vmatpush1.msra.mxu0 0.0
      %1295 = vmatprep.subr.mxu0 0.0
      %1296 = vmatpush1.msra.mxu0 0.0
      %1297 = vmatprep.subr.mxu0 0.0
      %1298 = vmatpush1.msra.mxu0 0.0
      %1299 = vmatprep.subr.mxu0 0.0
      %1300 = vmatpush1.msra.mxu0 0.0
      %1301 = vmatprep.subr.mxu0 0.0
      %1302 = vmatpush1.msra.mxu0 0.0
      %1303 = vmatprep.subr.mxu0 0.0
      %1304 = vmatpush1.msra.mxu0 0.0
      %1305 = vmatprep.subr.mxu0 0.0
      %1306 = vmatpush1.msra.mxu0 0.0
      %1307 = vmatprep.subr.mxu0 0.0
      %1308 = vmatpush1.msra.mxu0 0.0
      %1309 = vmatprep.subr.mxu0 0.0
      %1310 = vmatpush1.msra.mxu0 0.0
      %1311 = vmatprep.subr.mxu0 0.0
      %1312 = vmatpush1.msra.mxu0 0.0
      %1313 = vmatprep.subr.mxu0 0.0
      %1314 = vmatpush1.msra.mxu0 0.0
      %1315 = vmatprep.subr.mxu0 0.0
      %1316 = vmatpush1.msra.mxu0 0.0
      %1317 = vmatprep.subr.mxu0 0.0
      %1318 = vmatpush1.msra.mxu0 0.0
      %1319 = vmatprep.subr.mxu0 0.0
      %1320 = vmatpush1.msra.mxu0 0.0
      %1321 = vmatprep.subr.mxu0 0.0
      %1322 = vmatpush1.msra.mxu0 0.0
      %1323 = vmatprep.subr.mxu0 0.0
      %1324 = vmatpush1.msra.mxu0 0.0
      %1325 = vmatprep.subr.mxu0 0.0
      %1326 = vmatpush1.msra.mxu0 0.0
      %1327 = vmatprep.subr.mxu0 0.0
      %1328 = vmatpush1.msra.mxu0 0.0
      %1329 = vmatprep.subr.mxu0 0.0
      %1330 = vmatpush1.msra.mxu0 0.0
      %1331 = vmatprep.mubr.f32.mxu0 0.0
      %1332 = vmatmul.mubr.f32.gmra.mrb[0].mxu0 %v1265
      %v1333 = vpop.f32.mrb[0].mxu0
      %v1334 = vadd.f32 0.0, %v1333
      %v1335 = vpop.f32.mrb[0].mxu0
      %v1336 = vadd.f32 0.0, %v1335
      %1337 = vdwg.mxu0
      %v1339 = vsel %vm1263, %v1252, 0
      %1341 = vmatprep.subr.mxu0 %v1251
      %1342 = vmatpush1.msra.mxu0 %v1250
      %1343 = vmatprep.subr.mxu0 0.0
      %1344 = vmatpush1.msra.mxu0 0.0
      %1345 = vmatprep.subr.mxu0 0.0
      %1346 = vmatpush1.msra.mxu0 0.0
      %1347 = vmatprep.subr.mxu0 0.0
      %1348 = vmatpush1.msra.mxu0 0.0
      %1349 = vmatprep.subr.mxu0 0.0
      %1350 = vmatpush1.msra.mxu0 0.0
      %1351 = vmatprep.subr.mxu0 0.0
      %1352 = vmatpush1.msra.mxu0 0.0
      %1353 = vmatprep.subr.mxu0 0.0
      %1354 = vmatpush1.msra.mxu0 0.0
      %1355 = vmatprep.subr.mxu0 0.0
      %1356 = vmatpush1.msra.mxu0 0.0
      %1357 = vmatprep.subr.mxu0 0.0
      %1358 = vmatpush1.msra.mxu0 0.0
      %1359 = vmatprep.subr.mxu0 0.0
      %1360 = vmatpush1.msra.mxu0 0.0
      %1361 = vmatprep.subr.mxu0 0.0
      %1362 = vmatpush1.msra.mxu0 0.0
      %1363 = vmatprep.subr.mxu0 0.0
      %1364 = vmatpush1.msra.mxu0 0.0
      %1365 = vmatprep.subr.mxu0 0.0
      %1366 = vmatpush1.msra.mxu0 0.0
      %1367 = vmatprep.subr.mxu0 0.0
      %1368 = vmatpush1.msra.mxu0 0.0
      %1369 = vmatprep.subr.mxu0 0.0
      %1370 = vmatpush1.msra.mxu0 0.0
      %1371 = vmatprep.subr.mxu0 0.0
      %1372 = vmatpush1.msra.mxu0 0.0
      %1373 = vmatprep.subr.mxu0 0.0
      %1374 = vmatpush1.msra.mxu0 0.0
      %1375 = vmatprep.subr.mxu0 0.0
      %1376 = vmatpush1.msra.mxu0 0.0
      %1377 = vmatprep.subr.mxu0 0.0
      %1378 = vmatpush1.msra.mxu0 0.0
      %1379 = vmatprep.subr.mxu0 0.0
      %1380 = vmatpush1.msra.mxu0 0.0
      %1381 = vmatprep.subr.mxu0 0.0
      %1382 = vmatpush1.msra.mxu0 0.0
      %1383 = vmatprep.subr.mxu0 0.0
      %1384 = vmatpush1.msra.mxu0 0.0
      %1385 = vmatprep.subr.mxu0 0.0
      %1386 = vmatpush1.msra.mxu0 0.0
      %1387 = vmatprep.subr.mxu0 0.0
      %1388 = vmatpush1.msra.mxu0 0.0
      %1389 = vmatprep.subr.mxu0 0.0
      %1390 = vmatpush1.msra.mxu0 0.0
      %1391 = vmatprep.subr.mxu0 0.0
      %1392 = vmatpush1.msra.mxu0 0.0
      %1393 = vmatprep.subr.mxu0 0.0
      %1394 = vmatpush1.msra.mxu0 0.0
      %1395 = vmatprep.subr.mxu0 0.0
      %1396 = vmatpush1.msra.mxu0 0.0
      %1397 = vmatprep.subr.mxu0 0.0
      %1398 = vmatpush1.msra.mxu0 0.0
      %1399 = vmatprep.subr.mxu0 0.0
      %1400 = vmatpush1.msra.mxu0 0.0
      %1401 = vmatprep.subr.mxu0 0.0
      %1402 = vmatpush1.msra.mxu0 0.0
      %1403 = vmatprep.subr.mxu0 0.0
      %1404 = vmatpush1.msra.mxu0 0.0
      %1405 = vmatprep.mubr.f32.mxu0 0.0
      %1406 = vmatmul.mubr.f32.gmra.mrb[0].mxu0 %v1339
      %v1407 = vpop.f32.mrb[0].mxu0
      %v1408 = vadd.f32 %v1334, %v1407
      %v1409 = vpop.f32.mrb[0].mxu0
      %v1410 = vadd.f32 %v1336, %v1409
      %1411 = vdwg.mxu0
      %1412 = vrot.lane.b32.xlu0 %v1242, 15
      %v1413 = vpop.permute.xlu0 %1412
      %1414 = vrot.lane.b32.xlu0 %v1243, 15
      %v1415 = vpop.permute.xlu0 %1414
      %v1416 = vsel %vm527, %v1413, %v1415
      %v1417 = vsel %vm527, %v1415, %v1413
      %v1418 = vsel %vm541, %v1417, 0.0
      %v1419 = vsel %vm542, %v1416, 0.0
      %s1420 = scalar_lea.vmem %s4, 16
      %v1421 = vld [vmem:[%s1420] sm:$0xff]
      %v1423 = vsel %vm1263, %v1421, 0
      %1425 = vmatprep.subr.mxu0 %v1419
      %1426 = vmatpush1.msra.mxu0 %v1418
      %1427 = vmatprep.subr.mxu0 0.0
      %1428 = vmatpush1.msra.mxu0 0.0
      %1429 = vmatprep.subr.mxu0 0.0
      %1430 = vmatpush1.msra.mxu0 0.0
      %1431 = vmatprep.subr.mxu0 0.0
      %1432 = vmatpush1.msra.mxu0 0.0
      %1433 = vmatprep.subr.mxu0 0.0
      %1434 = vmatpush1.msra.mxu0 0.0
      %1435 = vmatprep.subr.mxu0 0.0
      %1436 = vmatpush1.msra.mxu0 0.0
      %1437 = vmatprep.subr.mxu0 0.0
      %1438 = vmatpush1.msra.mxu0 0.0
      %1439 = vmatprep.subr.mxu0 0.0
      %1440 = vmatpush1.msra.mxu0 0.0
      %1441 = vmatprep.subr.mxu0 0.0
      %1442 = vmatpush1.msra.mxu0 0.0
      %1443 = vmatprep.subr.mxu0 0.0
      %1444 = vmatpush1.msra.mxu0 0.0
      %1445 = vmatprep.subr.mxu0 0.0
      %1446 = vmatpush1.msra.mxu0 0.0
      %1447 = vmatprep.subr.mxu0 0.0
      %1448 = vmatpush1.msra.mxu0 0.0
      %1449 = vmatprep.subr.mxu0 0.0
      %1450 = vmatpush1.msra.mxu0 0.0
      %1451 = vmatprep.subr.mxu0 0.0
      %1452 = vmatpush1.msra.mxu0 0.0
      %1453 = vmatprep.subr.mxu0 0.0
      %1454 = vmatpush1.msra.mxu0 0.0
      %1455 = vmatprep.subr.mxu0 0.0
      %1456 = vmatpush1.msra.mxu0 0.0
      %1457 = vmatprep.subr.mxu0 0.0
      %1458 = vmatpush1.msra.mxu0 0.0
      %1459 = vmatprep.subr.mxu0 0.0
      %1460 = vmatpush1.msra.mxu0 0.0
      %1461 = vmatprep.subr.mxu0 0.0
      %1462 = vmatpush1.msra.mxu0 0.0
      %1463 = vmatprep.subr.mxu0 0.0
      %1464 = vmatpush1.msra.mxu0 0.0
      %1465 = vmatprep.subr.mxu0 0.0
      %1466 = vmatpush1.msra.mxu0 0.0
      %1467 = vmatprep.subr.mxu0 0.0
      %1468 = vmatpush1.msra.mxu0 0.0
      %1469 = vmatprep.subr.mxu0 0.0
      %1470 = vmatpush1.msra.mxu0 0.0
      %1471 = vmatprep.subr.mxu0 0.0
      %1472 = vmatpush1.msra.mxu0 0.0
      %1473 = vmatprep.subr.mxu0 0.0
      %1474 = vmatpush1.msra.mxu0 0.0
      %1475 = vmatprep.subr.mxu0 0.0
      %1476 = vmatpush1.msra.mxu0 0.0
      %1477 = vmatprep.subr.mxu0 0.0
      %1478 = vmatpush1.msra.mxu0 0.0
      %1479 = vmatprep.subr.mxu0 0.0
      %1480 = vmatpush1.msra.mxu0 0.0
      %1481 = vmatprep.subr.mxu0 0.0
      %1482 = vmatpush1.msra.mxu0 0.0
      %1483 = vmatprep.subr.mxu0 0.0
      %1484 = vmatpush1.msra.mxu0 0.0
      %1485 = vmatprep.subr.mxu0 0.0
      %1486 = vmatpush1.msra.mxu0 0.0
      %1487 = vmatprep.subr.mxu0 0.0
      %1488 = vmatpush1.msra.mxu0 0.0
      %1489 = vmatprep.mubr.f32.mxu0 0.0
      %1490 = vmatmul.mubr.f32.gmra.mrb[0].mxu0 %v1423
      %v1491 = vpop.f32.mrb[0].mxu0
      %v1492 = vadd.f32 0.0, %v1491
      %v1493 = vpop.f32.mrb[0].mxu0
      %v1494 = vadd.f32 0.0, %v1493
      %1495 = vdwg.mxu0
      %v1496 = vadd.f32 %v1408, %v1492
      %v1497 = vadd.f32 %v1410, %v1494
      %1498 = vrot.lane.b32.xlu0 %v1242, 1
      %v1499 = vpop.permute.xlu0 %1498
      %1500 = vrot.lane.b32.xlu0 %v1243, 1
      %v1501 = vpop.permute.xlu0 %1500
      %v1502 = vsel %vm633, %v1499, %v1501
      %v1503 = vsel %vm633, %v1501, %v1499
      %v1504 = vsel %vm645, %v1503, 0.0
      %v1505 = vsel %vm646, %v1502, 0.0
      %s1506 = scalar_lea.vmem %s4, 24
      %v1507 = vld [vmem:[%s1506] sm:$0xff]
      %v1509 = vsel %vm1263, %v1507, 0
      %1511 = vmatprep.subr.mxu0 %v1505
      %1512 = vmatpush1.msra.mxu0 %v1504
      %1513 = vmatprep.subr.mxu0 0.0
      %1514 = vmatpush1.msra.mxu0 0.0
      %1515 = vmatprep.subr.mxu0 0.0
      %1516 = vmatpush1.msra.mxu0 0.0
      %1517 = vmatprep.subr.mxu0 0.0
      %1518 = vmatpush1.msra.mxu0 0.0
      %1519 = vmatprep.subr.mxu0 0.0
      %1520 = vmatpush1.msra.mxu0 0.0
      %1521 = vmatprep.subr.mxu0 0.0
      %1522 = vmatpush1.msra.mxu0 0.0
      %1523 = vmatprep.subr.mxu0 0.0
      %1524 = vmatpush1.msra.mxu0 0.0
      %1525 = vmatprep.subr.mxu0 0.0
      %1526 = vmatpush1.msra.mxu0 0.0
      %1527 = vmatprep.subr.mxu0 0.0
      %1528 = vmatpush1.msra.mxu0 0.0
      %1529 = vmatprep.subr.mxu0 0.0
      %1530 = vmatpush1.msra.mxu0 0.0
      %1531 = vmatprep.subr.mxu0 0.0
      %1532 = vmatpush1.msra.mxu0 0.0
      %1533 = vmatprep.subr.mxu0 0.0
      %1534 = vmatpush1.msra.mxu0 0.0
      %1535 = vmatprep.subr.mxu0 0.0
      %1536 = vmatpush1.msra.mxu0 0.0
      %1537 = vmatprep.subr.mxu0 0.0
      %1538 = vmatpush1.msra.mxu0 0.0
      %1539 = vmatprep.subr.mxu0 0.0
      %1540 = vmatpush1.msra.mxu0 0.0
      %1541 = vmatprep.subr.mxu0 0.0
      %1542 = vmatpush1.msra.mxu0 0.0
      %1543 = vmatprep.subr.mxu0 0.0
      %1544 = vmatpush1.msra.mxu0 0.0
      %1545 = vmatprep.subr.mxu0 0.0
      %1546 = vmatpush1.msra.mxu0 0.0
      %1547 = vmatprep.subr.mxu0 0.0
      %1548 = vmatpush1.msra.mxu0 0.0
      %1549 = vmatprep.subr.mxu0 0.0
      %1550 = vmatpush1.msra.mxu0 0.0
      %1551 = vmatprep.subr.mxu0 0.0
      %1552 = vmatpush1.msra.mxu0 0.0
      %1553 = vmatprep.subr.mxu0 0.0
      %1554 = vmatpush1.msra.mxu0 0.0
      %1555 = vmatprep.subr.mxu0 0.0
      %1556 = vmatpush1.msra.mxu0 0.0
      %1557 = vmatprep.subr.mxu0 0.0
      %1558 = vmatpush1.msra.mxu0 0.0
      %1559 = vmatprep.subr.mxu0 0.0
      %1560 = vmatpush1.msra.mxu0 0.0
      %1561 = vmatprep.subr.mxu0 0.0
      %1562 = vmatpush1.msra.mxu0 0.0
      %1563 = vmatprep.subr.mxu0 0.0
      %1564 = vmatpush1.msra.mxu0 0.0
      %1565 = vmatprep.subr.mxu0 0.0
      %1566 = vmatpush1.msra.mxu0 0.0
      %1567 = vmatprep.subr.mxu0 0.0
      %1568 = vmatpush1.msra.mxu0 0.0
      %1569 = vmatprep.subr.mxu0 0.0
      %1570 = vmatpush1.msra.mxu0 0.0
      %1571 = vmatprep.subr.mxu0 0.0
      %1572 = vmatpush1.msra.mxu0 0.0
      %1573 = vmatprep.subr.mxu0 0.0
      %1574 = vmatpush1.msra.mxu0 0.0
      %1575 = vmatprep.mubr.f32.mxu0 0.0
      %1576 = vmatmul.mubr.f32.gmra.mrb[0].mxu0 %v1509
      %v1577 = vpop.f32.mrb[0].mxu0
      %v1578 = vadd.f32 0.0, %v1577
      %v1579 = vpop.f32.mrb[0].mxu0
      %v1580 = vadd.f32 0.0, %v1579
      %1581 = vdwg.mxu0
      %v1582 = vadd.f32 %v1496, %v1578
      %v1583 = vadd.f32 %v1497, %v1580
      %s1584 = scalar_lea.vmem %s4, 32
      %v1585 = vld [vmem:[%s1584] sm:$0xff]
      %v1587 = vsel %vm1263, %v1585, 0
      %1589 = vmatprep.subr.mxu0 %v1243
      %1590 = vmatpush1.msra.mxu0 %v1242
      %1591 = vmatprep.subr.mxu0 0.0
      %1592 = vmatpush1.msra.mxu0 0.0
      %1593 = vmatprep.subr.mxu0 0.0
      %1594 = vmatpush1.msra.mxu0 0.0
      %1595 = vmatprep.subr.mxu0 0.0
      %1596 = vmatpush1.msra.mxu0 0.0
      %1597 = vmatprep.subr.mxu0 0.0
      %1598 = vmatpush1.msra.mxu0 0.0
      %1599 = vmatprep.subr.mxu0 0.0
      %1600 = vmatpush1.msra.mxu0 0.0
      %1601 = vmatprep.subr.mxu0 0.0
      %1602 = vmatpush1.msra.mxu0 0.0
      %1603 = vmatprep.subr.mxu0 0.0
      %1604 = vmatpush1.msra.mxu0 0.0
      %1605 = vmatprep.subr.mxu0 0.0
      %1606 = vmatpush1.msra.mxu0 0.0
      %1607 = vmatprep.subr.mxu0 0.0
      %1608 = vmatpush1.msra.mxu0 0.0
      %1609 = vmatprep.subr.mxu0 0.0
      %1610 = vmatpush1.msra.mxu0 0.0
      %1611 = vmatprep.subr.mxu0 0.0
      %1612 = vmatpush1.msra.mxu0 0.0
      %1613 = vmatprep.subr.mxu0 0.0
      %1614 = vmatpush1.msra.mxu0 0.0
      %1615 = vmatprep.subr.mxu0 0.0
      %1616 = vmatpush1.msra.mxu0 0.0
      %1617 = vmatprep.subr.mxu0 0.0
      %1618 = vmatpush1.msra.mxu0 0.0
      %1619 = vmatprep.subr.mxu0 0.0
      %1620 = vmatpush1.msra.mxu0 0.0
      %1621 = vmatprep.subr.mxu0 0.0
      %1622 = vmatpush1.msra.mxu0 0.0
      %1623 = vmatprep.subr.mxu0 0.0
      %1624 = vmatpush1.msra.mxu0 0.0
      %1625 = vmatprep.subr.mxu0 0.0
      %1626 = vmatpush1.msra.mxu0 0.0
      %1627 = vmatprep.subr.mxu0 0.0
      %1628 = vmatpush1.msra.mxu0 0.0
      %1629 = vmatprep.subr.mxu0 0.0
      %1630 = vmatpush1.msra.mxu0 0.0
      %1631 = vmatprep.subr.mxu0 0.0
      %1632 = vmatpush1.msra.mxu0 0.0
      %1633 = vmatprep.subr.mxu0 0.0
      %1634 = vmatpush1.msra.mxu0 0.0
      %1635 = vmatprep.subr.mxu0 0.0
      %1636 = vmatpush1.msra.mxu0 0.0
      %1637 = vmatprep.subr.mxu0 0.0
      %1638 = vmatpush1.msra.mxu0 0.0
      %1639 = vmatprep.subr.mxu0 0.0
      %1640 = vmatpush1.msra.mxu0 0.0
      %1641 = vmatprep.subr.mxu0 0.0
      %1642 = vmatpush1.msra.mxu0 0.0
      %1643 = vmatprep.subr.mxu0 0.0
      %1644 = vmatpush1.msra.mxu0 0.0
      %1645 = vmatprep.subr.mxu0 0.0
      %1646 = vmatpush1.msra.mxu0 0.0
      %1647 = vmatprep.subr.mxu0 0.0
      %1648 = vmatpush1.msra.mxu0 0.0
      %1649 = vmatprep.subr.mxu0 0.0
      %1650 = vmatpush1.msra.mxu0 0.0
      %1651 = vmatprep.subr.mxu0 0.0
      %1652 = vmatpush1.msra.mxu0 0.0
      %1653 = vmatprep.mubr.f32.mxu0 0.0
      %1654 = vmatmul.mubr.f32.gmra.mrb[0].mxu0 %v1587
      %v1655 = vpop.f32.mrb[0].mxu0
      %v1656 = vadd.f32 0.0, %v1655
      %v1657 = vpop.f32.mrb[0].mxu0
      %v1658 = vadd.f32 0.0, %v1657
      %1659 = vdwg.mxu0
      %v1660 = vadd.f32 %v1582, %v1656
      %v1661 = vadd.f32 %v1583, %v1658
      %1662 = vrot.lane.b32.xlu0 %v1242, 127
      %v1663 = vpop.permute.xlu0 %1662
      %1664 = vrot.lane.b32.xlu0 %v1243, 127
      %v1665 = vpop.permute.xlu0 %1664
      %v1666 = vsel %vm819, %v1663, %v1665
      %v1667 = vsel %vm819, %v1665, %v1663
      %v1668 = vsel %vm831, %v1666, 0.0
      %v1669 = vsel %vm832, %v1667, 0.0
      %s1670 = scalar_lea.vmem %s4, 40
      %v1671 = vld [vmem:[%s1670] sm:$0xff]
      %v1673 = vsel %vm1263, %v1671, 0
      %1675 = vmatprep.subr.mxu0 %v1669
      %1676 = vmatpush1.msra.mxu0 %v1668
      %1677 = vmatprep.subr.mxu0 0.0
      %1678 = vmatpush1.msra.mxu0 0.0
      %1679 = vmatprep.subr.mxu0 0.0
      %1680 = vmatpush1.msra.mxu0 0.0
      %1681 = vmatprep.subr.mxu0 0.0
      %1682 = vmatpush1.msra.mxu0 0.0
      %1683 = vmatprep.subr.mxu0 0.0
      %1684 = vmatpush1.msra.mxu0 0.0
      %1685 = vmatprep.subr.mxu0 0.0
      %1686 = vmatpush1.msra.mxu0 0.0
      %1687 = vmatprep.subr.mxu0 0.0
      %1688 = vmatpush1.msra.mxu0 0.0
      %1689 = vmatprep.subr.mxu0 0.0
      %1690 = vmatpush1.msra.mxu0 0.0
      %1691 = vmatprep.subr.mxu0 0.0
      %1692 = vmatpush1.msra.mxu0 0.0
      %1693 = vmatprep.subr.mxu0 0.0
      %1694 = vmatpush1.msra.mxu0 0.0
      %1695 = vmatprep.subr.mxu0 0.0
      %1696 = vmatpush1.msra.mxu0 0.0
      %1697 = vmatprep.subr.mxu0 0.0
      %1698 = vmatpush1.msra.mxu0 0.0
      %1699 = vmatprep.subr.mxu0 0.0
      %1700 = vmatpush1.msra.mxu0 0.0
      %1701 = vmatprep.subr.mxu0 0.0
      %1702 = vmatpush1.msra.mxu0 0.0
      %1703 = vmatprep.subr.mxu0 0.0
      %1704 = vmatpush1.msra.mxu0 0.0
      %1705 = vmatprep.subr.mxu0 0.0
      %1706 = vmatpush1.msra.mxu0 0.0
      %1707 = vmatprep.subr.mxu0 0.0
      %1708 = vmatpush1.msra.mxu0 0.0
      %1709 = vmatprep.subr.mxu0 0.0
      %1710 = vmatpush1.msra.mxu0 0.0
      %1711 = vmatprep.subr.mxu0 0.0
      %1712 = vmatpush1.msra.mxu0 0.0
      %1713 = vmatprep.subr.mxu0 0.0
      %1714 = vmatpush1.msra.mxu0 0.0
      %1715 = vmatprep.subr.mxu0 0.0
      %1716 = vmatpush1.msra.mxu0 0.0
      %1717 = vmatprep.subr.mxu0 0.0
      %1718 = vmatpush1.msra.mxu0 0.0
      %1719 = vmatprep.subr.mxu0 0.0
      %1720 = vmatpush1.msra.mxu0 0.0
      %1721 = vmatprep.subr.mxu0 0.0
      %1722 = vmatpush1.msra.mxu0 0.0
      %1723 = vmatprep.subr.mxu0 0.0
      %1724 = vmatpush1.msra.mxu0 0.0
      %1725 = vmatprep.subr.mxu0 0.0
      %1726 = vmatpush1.msra.mxu0 0.0
      %1727 = vmatprep.subr.mxu0 0.0
      %1728 = vmatpush1.msra.mxu0 0.0
      %1729 = vmatprep.subr.mxu0 0.0
      %1730 = vmatpush1.msra.mxu0 0.0
      %1731 = vmatprep.subr.mxu0 0.0
      %1732 = vmatpush1.msra.mxu0 0.0
      %1733 = vmatprep.subr.mxu0 0.0
      %1734 = vmatpush1.msra.mxu0 0.0
      %1735 = vmatprep.subr.mxu0 0.0
      %1736 = vmatpush1.msra.mxu0 0.0
      %1737 = vmatprep.subr.mxu0 0.0
      %1738 = vmatpush1.msra.mxu0 0.0
      %1739 = vmatprep.mubr.f32.mxu0 0.0
      %1740 = vmatmul.mubr.f32.gmra.mrb[0].mxu0 %v1673
      %v1741 = vpop.f32.mrb[0].mxu0
      %v1742 = vadd.f32 0.0, %v1741
      %v1743 = vpop.f32.mrb[0].mxu0
      %v1744 = vadd.f32 0.0, %v1743
      %1745 = vdwg.mxu0
      %v1746 = vadd.f32 %v1660, %v1742
      %v1747 = vadd.f32 %v1661, %v1744
      %1748 = vrot.lane.b32.xlu0 %v1242, 113
      %v1749 = vpop.permute.xlu0 %1748
      %1750 = vrot.lane.b32.xlu0 %v1243, 113
      %v1751 = vpop.permute.xlu0 %1750
      %v1752 = vsel %vm923, %v1749, %v1751
      %v1753 = vsel %vm923, %v1751, %v1749
      %v1754 = vsel %vm937, %v1752, 0.0
      %v1755 = vsel %vm938, %v1753, 0.0
      %s1756 = scalar_lea.vmem %s4, 48
      %v1757 = vld [vmem:[%s1756] sm:$0xff]
      %v1759 = vsel %vm1263, %v1757, 0
      %1761 = vmatprep.subr.mxu0 %v1755
      %1762 = vmatpush1.msra.mxu0 %v1754
      %1763 = vmatprep.subr.mxu0 0.0
      %1764 = vmatpush1.msra.mxu0 0.0
      %1765 = vmatprep.subr.mxu0 0.0
      %1766 = vmatpush1.msra.mxu0 0.0
      %1767 = vmatprep.subr.mxu0 0.0
      %1768 = vmatpush1.msra.mxu0 0.0
      %1769 = vmatprep.subr.mxu0 0.0
      %1770 = vmatpush1.msra.mxu0 0.0
      %1771 = vmatprep.subr.mxu0 0.0
      %1772 = vmatpush1.msra.mxu0 0.0
      %1773 = vmatprep.subr.mxu0 0.0
      %1774 = vmatpush1.msra.mxu0 0.0
      %1775 = vmatprep.subr.mxu0 0.0
      %1776 = vmatpush1.msra.mxu0 0.0
      %1777 = vmatprep.subr.mxu0 0.0
      %1778 = vmatpush1.msra.mxu0 0.0
      %1779 = vmatprep.subr.mxu0 0.0
      %1780 = vmatpush1.msra.mxu0 0.0
      %1781 = vmatprep.subr.mxu0 0.0
      %1782 = vmatpush1.msra.mxu0 0.0
      %1783 = vmatprep.subr.mxu0 0.0
      %1784 = vmatpush1.msra.mxu0 0.0
      %1785 = vmatprep.subr.mxu0 0.0
      %1786 = vmatpush1.msra.mxu0 0.0
      %1787 = vmatprep.subr.mxu0 0.0
      %1788 = vmatpush1.msra.mxu0 0.0
      %1789 = vmatprep.subr.mxu0 0.0
      %1790 = vmatpush1.msra.mxu0 0.0
      %1791 = vmatprep.subr.mxu0 0.0
      %1792 = vmatpush1.msra.mxu0 0.0
      %1793 = vmatprep.subr.mxu0 0.0
      %1794 = vmatpush1.msra.mxu0 0.0
      %1795 = vmatprep.subr.mxu0 0.0
      %1796 = vmatpush1.msra.mxu0 0.0
      %1797 = vmatprep.subr.mxu0 0.0
      %1798 = vmatpush1.msra.mxu0 0.0
      %1799 = vmatprep.subr.mxu0 0.0
      %1800 = vmatpush1.msra.mxu0 0.0
      %1801 = vmatprep.subr.mxu0 0.0
      %1802 = vmatpush1.msra.mxu0 0.0
      %1803 = vmatprep.subr.mxu0 0.0
      %1804 = vmatpush1.msra.mxu0 0.0
      %1805 = vmatprep.subr.mxu0 0.0
      %1806 = vmatpush1.msra.mxu0 0.0
      %1807 = vmatprep.subr.mxu0 0.0
      %1808 = vmatpush1.msra.mxu0 0.0
      %1809 = vmatprep.subr.mxu0 0.0
      %1810 = vmatpush1.msra.mxu0 0.0
      %1811 = vmatprep.subr.mxu0 0.0
      %1812 = vmatpush1.msra.mxu0 0.0
      %1813 = vmatprep.subr.mxu0 0.0
      %1814 = vmatpush1.msra.mxu0 0.0
      %1815 = vmatprep.subr.mxu0 0.0
      %1816 = vmatpush1.msra.mxu0 0.0
      %1817 = vmatprep.subr.mxu0 0.0
      %1818 = vmatpush1.msra.mxu0 0.0
      %1819 = vmatprep.subr.mxu0 0.0
      %1820 = vmatpush1.msra.mxu0 0.0
      %1821 = vmatprep.subr.mxu0 0.0
      %1822 = vmatpush1.msra.mxu0 0.0
      %1823 = vmatprep.subr.mxu0 0.0
      %1824 = vmatpush1.msra.mxu0 0.0
      %1825 = vmatprep.mubr.f32.mxu0 0.0
      %1826 = vmatmul.mubr.f32.gmra.mrb[0].mxu0 %v1759
      %v1827 = vpop.f32.mrb[0].mxu0
      %v1828 = vadd.f32 0.0, %v1827
      %v1829 = vpop.f32.mrb[0].mxu0
      %v1830 = vadd.f32 0.0, %v1829
      %1831 = vdwg.mxu0
      %v1832 = vadd.f32 %v1746, %v1828
      %v1833 = vadd.f32 %v1747, %v1830
      %1834 = vrot.lane.b32.xlu0 %v1242, 112
      %v1835 = vpop.permute.xlu0 %1834
      %1836 = vrot.lane.b32.xlu0 %v1243, 112
      %v1837 = vpop.permute.xlu0 %1836
      %v1838 = vsel %vm1029, %v1835, %v1837
      %v1839 = vsel %vm1029, %v1837, %v1835
      %v1840 = vsel %vm1041, %v1838, 0.0
      %v1841 = vsel %vm1042, %v1839, 0.0
      %s1842 = scalar_lea.vmem %s4, 56
      %v1843 = vld [vmem:[%s1842] sm:$0xff]
      %v1845 = vsel %vm1263, %v1843, 0
      %1847 = vmatprep.subr.mxu0 %v1841
      %1848 = vmatpush1.msra.mxu0 %v1840
      %1849 = vmatprep.subr.mxu0 0.0
      %1850 = vmatpush1.msra.mxu0 0.0
      %1851 = vmatprep.subr.mxu0 0.0
      %1852 = vmatpush1.msra.mxu0 0.0
      %1853 = vmatprep.subr.mxu0 0.0
      %1854 = vmatpush1.msra.mxu0 0.0
      %1855 = vmatprep.subr.mxu0 0.0
      %1856 = vmatpush1.msra.mxu0 0.0
      %1857 = vmatprep.subr.mxu0 0.0
      %1858 = vmatpush1.msra.mxu0 0.0
      %1859 = vmatprep.subr.mxu0 0.0
      %1860 = vmatpush1.msra.mxu0 0.0
      %1861 = vmatprep.subr.mxu0 0.0
      %1862 = vmatpush1.msra.mxu0 0.0
      %1863 = vmatprep.subr.mxu0 0.0
      %1864 = vmatpush1.msra.mxu0 0.0
      %1865 = vmatprep.subr.mxu0 0.0
      %1866 = vmatpush1.msra.mxu0 0.0
      %1867 = vmatprep.subr.mxu0 0.0
      %1868 = vmatpush1.msra.mxu0 0.0
      %1869 = vmatprep.subr.mxu0 0.0
      %1870 = vmatpush1.msra.mxu0 0.0
      %1871 = vmatprep.subr.mxu0 0.0
      %1872 = vmatpush1.msra.mxu0 0.0
      %1873 = vmatprep.subr.mxu0 0.0
      %1874 = vmatpush1.msra.mxu0 0.0
      %1875 = vmatprep.subr.mxu0 0.0
      %1876 = vmatpush1.msra.mxu0 0.0
      %1877 = vmatprep.subr.mxu0 0.0
      %1878 = vmatpush1.msra.mxu0 0.0
      %1879 = vmatprep.subr.mxu0 0.0
      %1880 = vmatpush1.msra.mxu0 0.0
      %1881 = vmatprep.subr.mxu0 0.0
      %1882 = vmatpush1.msra.mxu0 0.0
      %1883 = vmatprep.subr.mxu0 0.0
      %1884 = vmatpush1.msra.mxu0 0.0
      %1885 = vmatprep.subr.mxu0 0.0
      %1886 = vmatpush1.msra.mxu0 0.0
      %1887 = vmatprep.subr.mxu0 0.0
      %1888 = vmatpush1.msra.mxu0 0.0
      %1889 = vmatprep.subr.mxu0 0.0
      %1890 = vmatpush1.msra.mxu0 0.0
      %1891 = vmatprep.subr.mxu0 0.0
      %1892 = vmatpush1.msra.mxu0 0.0
      %1893 = vmatprep.subr.mxu0 0.0
      %1894 = vmatpush1.msra.mxu0 0.0
      %1895 = vmatprep.subr.mxu0 0.0
      %1896 = vmatpush1.msra.mxu0 0.0
      %1897 = vmatprep.subr.mxu0 0.0
      %1898 = vmatpush1.msra.mxu0 0.0
      %1899 = vmatprep.subr.mxu0 0.0
      %1900 = vmatpush1.msra.mxu0 0.0
      %1901 = vmatprep.subr.mxu0 0.0
      %1902 = vmatpush1.msra.mxu0 0.0
      %1903 = vmatprep.subr.mxu0 0.0
      %1904 = vmatpush1.msra.mxu0 0.0
      %1905 = vmatprep.subr.mxu0 0.0
      %1906 = vmatpush1.msra.mxu0 0.0
      %1907 = vmatprep.subr.mxu0 0.0
      %1908 = vmatpush1.msra.mxu0 0.0
      %1909 = vmatprep.subr.mxu0 0.0
      %1910 = vmatpush1.msra.mxu0 0.0
      %1911 = vmatprep.mubr.f32.mxu0 0.0
      %1912 = vmatmul.mubr.f32.gmra.mrb[0].mxu0 %v1845
      %v1913 = vpop.f32.mrb[0].mxu0
      %v1914 = vadd.f32 0.0, %v1913
      %v1915 = vpop.f32.mrb[0].mxu0
      %v1916 = vadd.f32 0.0, %v1915
      %1917 = vdwg.mxu0
      %v1918 = vadd.f32 %v1832, %v1914
      %v1919 = vadd.f32 %v1833, %v1916
      %1920 = vrot.lane.b32.xlu0 %v1242, 111
      %v1921 = vpop.permute.xlu0 %1920
      %1922 = vrot.lane.b32.xlu0 %v1243, 111
      %v1923 = vpop.permute.xlu0 %1922
      %v1924 = vsel %vm1133, %v1921, %v1923
      %v1925 = vsel %vm1133, %v1923, %v1921
      %v1926 = vsel %vm1146, %v1924, 0.0
      %v1927 = vsel %vm1147, %v1925, 0.0
      %s1928 = scalar_lea.vmem %s4, 64
      %v1929 = vld [vmem:[%s1928] sm:$0xff]
      %v1931 = vsel %vm1263, %v1929, 0
      %1933 = vmatprep.subr.mxu0 %v1927
      %1934 = vmatpush1.msra.mxu0 %v1926
      %1935 = vmatprep.subr.mxu0 0.0
      %1936 = vmatpush1.msra.mxu0 0.0
      %1937 = vmatprep.subr.mxu0 0.0
      %1938 = vmatpush1.msra.mxu0 0.0
      %1939 = vmatprep.subr.mxu0 0.0
      %1940 = vmatpush1.msra.mxu0 0.0
      %1941 = vmatprep.subr.mxu0 0.0
      %1942 = vmatpush1.msra.mxu0 0.0
      %1943 = vmatprep.subr.mxu0 0.0
      %1944 = vmatpush1.msra.mxu0 0.0
      %1945 = vmatprep.subr.mxu0 0.0
      %1946 = vmatpush1.msra.mxu0 0.0
      %1947 = vmatprep.subr.mxu0 0.0
      %1948 = vmatpush1.msra.mxu0 0.0
      %1949 = vmatprep.subr.mxu0 0.0
      %1950 = vmatpush1.msra.mxu0 0.0
      %1951 = vmatprep.subr.mxu0 0.0
      %1952 = vmatpush1.msra.mxu0 0.0
      %1953 = vmatprep.subr.mxu0 0.0
      %1954 = vmatpush1.msra.mxu0 0.0
      %1955 = vmatprep.subr.mxu0 0.0
      %1956 = vmatpush1.msra.mxu0 0.0
      %1957 = vmatprep.subr.mxu0 0.0
      %1958 = vmatpush1.msra.mxu0 0.0
      %1959 = vmatprep.subr.mxu0 0.0
      %1960 = vmatpush1.msra.mxu0 0.0
      %1961 = vmatprep.subr.mxu0 0.0
      %1962 = vmatpush1.msra.mxu0 0.0
      %1963 = vmatprep.subr.mxu0 0.0
      %1964 = vmatpush1.msra.mxu0 0.0
      %1965 = vmatprep.subr.mxu0 0.0
      %1966 = vmatpush1.msra.mxu0 0.0
      %1967 = vmatprep.subr.mxu0 0.0
      %1968 = vmatpush1.msra.mxu0 0.0
      %1969 = vmatprep.subr.mxu0 0.0
      %1970 = vmatpush1.msra.mxu0 0.0
      %1971 = vmatprep.subr.mxu0 0.0
      %1972 = vmatpush1.msra.mxu0 0.0
      %1973 = vmatprep.subr.mxu0 0.0
      %1974 = vmatpush1.msra.mxu0 0.0
      %1975 = vmatprep.subr.mxu0 0.0
      %1976 = vmatpush1.msra.mxu0 0.0
      %1977 = vmatprep.subr.mxu0 0.0
      %1978 = vmatpush1.msra.mxu0 0.0
      %1979 = vmatprep.subr.mxu0 0.0
      %1980 = vmatpush1.msra.mxu0 0.0
      %1981 = vmatprep.subr.mxu0 0.0
      %1982 = vmatpush1.msra.mxu0 0.0
      %1983 = vmatprep.subr.mxu0 0.0
      %1984 = vmatpush1.msra.mxu0 0.0
      %1985 = vmatprep.subr.mxu0 0.0
      %1986 = vmatpush1.msra.mxu0 0.0
      %1987 = vmatprep.subr.mxu0 0.0
      %1988 = vmatpush1.msra.mxu0 0.0
      %1989 = vmatprep.subr.mxu0 0.0
      %1990 = vmatpush1.msra.mxu0 0.0
      %1991 = vmatprep.subr.mxu0 0.0
      %1992 = vmatpush1.msra.mxu0 0.0
      %1993 = vmatprep.subr.mxu0 0.0
      %1994 = vmatpush1.msra.mxu0 0.0
      %1995 = vmatprep.subr.mxu0 0.0
      %1996 = vmatpush1.msra.mxu0 0.0
      %1997 = vmatprep.mubr.f32.mxu0 0.0
      %1998 = vmatmul.mubr.f32.gmra.mrb[0].mxu0 %v1931
      %v1999 = vpop.f32.mrb[0].mxu0
      %v2000 = vadd.f32 0.0, %v1999
      %v2001 = vpop.f32.mrb[0].mxu0
      %v2002 = vadd.f32 0.0, %v2001
      %2003 = vdwg.mxu0
      %v2004 = vadd.f32 %v1918, %v2000
      %v2005 = vadd.f32 %v1919, %v2002
      %v2006 = vld [vmem:[%s5] sm:$0xff]
      %2008 = vset.pattern.permute.xlu0 0
      %2009 = vperm.xlu0 %2008, %v2006
      %v2010 = vpop.permute.xlu0 %2009
      %v2012 = vadd.f32 %v2004, %v2010
      %v2013 = vadd.f32 %v2005, %v2010
      %v2014 = vmax.f32 %v2012, 0.0
      %v2015 = vmax.f32 %v2013, 0.0
      %v2016 = vld [vmem:[%s6] sm:$0xff]
      %v2017 = vld [vmem:[%s7] sm:$0xff]
      %2019 = vset.pattern.permute.xlu0 0
      %2020 = vperm.xlu0 %2019, %v2017
      %v2021 = vpop.permute.xlu0 %2020
      %v2024 = vsel %vm1263, %v2016, 0
      %2026 = vmatprep.subr.mxu0 %v2015
      %2027 = vmatpush1.msra.mxu0 %v2014
      %2028 = vmatprep.subr.mxu0 0.0
      %2029 = vmatpush1.msra.mxu0 0.0
      %2030 = vmatprep.subr.mxu0 0.0
      %2031 = vmatpush1.msra.mxu0 0.0
      %2032 = vmatprep.subr.mxu0 0.0
      %2033 = vmatpush1.msra.mxu0 0.0
      %2034 = vmatprep.subr.mxu0 0.0
      %2035 = vmatpush1.msra.mxu0 0.0
      %2036 = vmatprep.subr.mxu0 0.0
      %2037 = vmatpush1.msra.mxu0 0.0
      %2038 = vmatprep.subr.mxu0 0.0
      %2039 = vmatpush1.msra.mxu0 0.0
      %2040 = vmatprep.subr.mxu0 0.0
      %2041 = vmatpush1.msra.mxu0 0.0
      %2042 = vmatprep.subr.mxu0 0.0
      %2043 = vmatpush1.msra.mxu0 0.0
      %2044 = vmatprep.subr.mxu0 0.0
      %2045 = vmatpush1.msra.mxu0 0.0
      %2046 = vmatprep.subr.mxu0 0.0
      %2047 = vmatpush1.msra.mxu0 0.0
      %2048 = vmatprep.subr.mxu0 0.0
      %2049 = vmatpush1.msra.mxu0 0.0
      %2050 = vmatprep.subr.mxu0 0.0
      %2051 = vmatpush1.msra.mxu0 0.0
      %2052 = vmatprep.subr.mxu0 0.0
      %2053 = vmatpush1.msra.mxu0 0.0
      %2054 = vmatprep.subr.mxu0 0.0
      %2055 = vmatpush1.msra.mxu0 0.0
      %2056 = vmatprep.subr.mxu0 0.0
      %2057 = vmatpush1.msra.mxu0 0.0
      %2058 = vmatprep.subr.mxu0 0.0
      %2059 = vmatpush1.msra.mxu0 0.0
      %2060 = vmatprep.subr.mxu0 0.0
      %2061 = vmatpush1.msra.mxu0 0.0
      %2062 = vmatprep.subr.mxu0 0.0
      %2063 = vmatpush1.msra.mxu0 0.0
      %2064 = vmatprep.subr.mxu0 0.0
      %2065 = vmatpush1.msra.mxu0 0.0
      %2066 = vmatprep.subr.mxu0 0.0
      %2067 = vmatpush1.msra.mxu0 0.0
      %2068 = vmatprep.subr.mxu0 0.0
      %2069 = vmatpush1.msra.mxu0 0.0
      %2070 = vmatprep.subr.mxu0 0.0
      %2071 = vmatpush1.msra.mxu0 0.0
      %2072 = vmatprep.subr.mxu0 0.0
      %2073 = vmatpush1.msra.mxu0 0.0
      %2074 = vmatprep.subr.mxu0 0.0
      %2075 = vmatpush1.msra.mxu0 0.0
      %2076 = vmatprep.subr.mxu0 0.0
      %2077 = vmatpush1.msra.mxu0 0.0
      %2078 = vmatprep.subr.mxu0 0.0
      %2079 = vmatpush1.msra.mxu0 0.0
      %2080 = vmatprep.subr.mxu0 0.0
      %2081 = vmatpush1.msra.mxu0 0.0
      %2082 = vmatprep.subr.mxu0 0.0
      %2083 = vmatpush1.msra.mxu0 0.0
      %2084 = vmatprep.subr.mxu0 0.0
      %2085 = vmatpush1.msra.mxu0 0.0
      %2086 = vmatprep.subr.mxu0 0.0
      %2087 = vmatpush1.msra.mxu0 0.0
      %2088 = vmatprep.subr.mxu0 0.0
      %2089 = vmatpush1.msra.mxu0 0.0
      %2090 = vmatprep.mubr.f32.mxu0 0.0
      %2091 = vmatmul.mubr.f32.gmra.mrb[0].mxu0 %v2024
      %v2092 = vpop.f32.mrb[0].mxu0
      %v2093 = vadd.f32 %v2021, %v2092
      %v2094 = vpop.f32.mrb[0].mxu0
      %v2095 = vadd.f32 %v2021, %v2094
      %2096 = vdwg.mxu0
      %2097 = vst [vmem:[%s305] sm:$0xff] %v2093
      %2098 = vst [vmem:[%s305 + $0x8] sm:$0xff] %v2095
      %p2099 = scmp.lt.s32.totalorder %s19, 1
      %s2100 = scalar_select %p2099, %s19, 1
      %s2101 = smul.addr %s2100, 2
      %s2102 = smul.addr %s2101, 8
      %s2103 = scalar_lea.vmem %s8, %s2102
      // Predicated region
      $region53: #{shortcut_forward.1} parent=51 // pred_check
        %p2104 = pneg %p210
      $region54: #{shortcut_forward.1} parent=51 // pred_check_branch
        %2106 = sbr.rel (%p2104) target = $region56
      $region55: #{shortcut_forward.1} parent=51 // pred_region
        _
      $region56: #{shortcut_forward.1} parent=51 // pred_fallthru
        _
    $region52: #{shortcut_forward.1} parent=5 // pred_fallthru
      _
    %p2107 = scmp.le.s32.totalorder 2, %s14
    // Predicated region
    $region57: #{shortcut_forward.1} parent=5 // pred_check
      %p2108 = pneg %p2107
    $region58: #{shortcut_forward.1} parent=5 // pred_check_branch
      %2110 = sbr.rel (%p2108) target = $region60
    $region59: #{shortcut_forward.1} parent=5 // pred_region
      %s2111 = ssub.s32 %s14, 2
      // Predicated region
      $region61: #{shortcut_forward.1} parent=59 // pred_check
        %p2112 = pneg %p216
      $region62: #{shortcut_forward.1} parent=59 // pred_check_branch
        %2114 = sbr.rel (%p2112) target = $region64
      $region63: #{shortcut_forward.1} parent=59 // pred_region
        %p2115 = scmp.lt.s32.totalorder %s20, 1
        %s2116 = scalar_select %p2115, %s20, 1
        %s2117 = smul.addr %s2116, 2
        %s2118 = smul.addr %s2117, 8
        %s2119 = scalar_lea.vmem %s8, %s2118
      $region64: #{shortcut_forward.1} parent=59 // pred_fallthru
        _
    $region60: #{shortcut_forward.1} parent=5 // pred_fallthru
      _
  $region6: #{shortcut_forward.1} parent=0 // loop_footer
    %s18 = sadd.s32 1, %s14
  $region7: #{shortcut_forward.1} parent=0 // loop_footer_branch
    %13 = sbr.rel target = $region3
  $region8: #{shortcut_forward.1} parent=0 // loop_exit
    _

</llo_original>
